<compile_context>
chip_gen: v7x
topology: tpu7x:2x2x1
jax: 0.10.0
libtpu: 0.0.40
codegen_flags: <defaults>
</compile_context>

<pallas_src>
import jax
import jax.numpy as jnp
import numpy as np
from jax.experimental import pallas as pl
from jax.experimental.pallas import tpu as pltpu

EPS = 1e-5


def make_basic_block_kernel(H):
    """Kernel factory; H (rows per image) is a static closure constant."""

    def kernel(x_ref, w1b_ref, w2b_ref, pfold_ref, g1_ref, b1_ref,
               g2_ref, b2_ref, o_ref):
        NH, WC = x_ref.shape                 # (N*H, W*C) lane-dense activations
        WO = o_ref.shape[1]                  # W*O (== W*C here)
        inv_rows = 1.0 / NH                  # 1/(N*H); 1/W is baked into pfold

        # Per-image row index of every sublane row, for H-boundary masking of
        # the rolled tap contributions (also kills cross-image wraparound).
        h_idx = jax.lax.broadcasted_iota(jnp.int32, (NH, WO), 0) % H
        top_row = h_idx == 0                 # dy=0 tap would read padded row -1
        bot_row = h_idx == H - 1             # dy=2 tap would read padded row H

        def conv3x3(src_f32, wb_ref):
            # 3 MXU contractions (K = W*C) on the unshifted activation; the kw
            # taps and W zero-padding are folded into the banded RHS, the kh
            # taps are realigned afterwards with XLU sublane rolls + masks.
            lhs = src_f32.astype(jnp.bfloat16)                       # (NH, WC)
            p0 = jnp.dot(lhs, wb_ref[0], preferred_element_type=jnp.float32)
            p1 = jnp.dot(lhs, wb_ref[1], preferred_element_type=jnp.float32)
            p2 = jnp.dot(lhs, wb_ref[2], preferred_element_type=jnp.float32)
            # out[h] = p0[h-1] + p1[h] + p2[h+1]
            acc = p1
            acc = acc + jnp.where(top_row, 0.0, pltpu.roll(p0, shift=1, axis=0))
            acc = acc + jnp.where(bot_row, 0.0,
                                  pltpu.roll(p2, shift=NH - 1, axis=0))
            return acc                                                # (NH, WO) f32

        def batchnorm(acc, g_ref, b_ref):
            # Training-mode BN, fully in lane space.  pfold (WO, WO) folds the
            # W lane-groups of a channel and broadcasts the result back to all
            # lanes of that channel in one small MXU matmul (replaces the
            # reshape/mean/tile cross-lane plumbing).  One-pass f32 stats.
            colmean = jnp.sum(acc, axis=0, keepdims=True) * inv_rows        # (1, WO)
            colsq = jnp.sum(acc * acc, axis=0, keepdims=True) * inv_rows    # (1, WO)
            m_l = jnp.dot(colmean, pfold_ref[...],
                          preferred_element_type=jnp.float32)               # (1, WO)
            e2_l = jnp.dot(colsq, pfold_ref[...],
                           preferred_element_type=jnp.float32)              # (1, WO)
            var_l = e2_l - m_l * m_l                                         # biased var
            scale = g_ref[...] * jax.lax.rsqrt(var_l + EPS)                  # (1, WO)
            shift = b_ref[...] - m_l * scale                                 # (1, WO)
            return acc * scale + shift

        # ---- conv1 -> bn1 -> relu ----
        y1 = jnp.maximum(batchnorm(conv3x3(x_ref[...], w1b_ref),
                                   g1_ref, b1_ref), 0.0)

        # ---- conv2 -> bn2 -> identity shortcut -> relu ----
        # Re-read x at the point of use instead of holding it live across both convs.
        y2 = batchnorm(conv3x3(y1, w2b_ref), g2_ref, b2_ref) + x_ref[...]
        o_ref[...] = jnp.maximum(y2, 0.0).astype(o_ref.dtype)

    return kernel


def pack_banded_weights(w_oihw, w_sp):
    """OIHW (O, C, 3, 3) -> (3, W*C, W*O) banded (Toeplitz-in-W) bf16 matrices.

    B[dy, w_in*C + c, w_out*O + o] = w[o, c, dy, w_in - w_out + 1]
    (zero outside the 3-tap band), so one (N*H, W*C) @ B[dy] matmul performs
    all three kw taps AND the W zero-padding for that kh tap.  Pure host-side
    weight re-layout (no arithmetic)."""
    O, C, KH, KW = w_oihw.shape
    w = np.asarray(w_oihw, dtype=np.float32)
    B = np.zeros((KH, w_sp * C, w_sp * O), dtype=np.float32)
    for dy in range(KH):
        for w_out in range(w_sp):
            for dx in range(KW):
                w_in = w_out + dx - 1
                if 0 <= w_in < w_sp:
                    B[dy, w_in * C:(w_in + 1) * C,
                      w_out * O:(w_out + 1) * O] = w[:, :, dy, dx].T
    return jnp.asarray(B, dtype=jnp.bfloat16)


def make_fold_broadcast(w_sp, n_ch):
    """(W*O, W*O) selector: folds the W lane-groups of each channel (mean over
    W) and broadcasts the per-channel result back to every lane of that
    channel.  P[i, j] = 1/W if i % O == j % O else 0."""
    idx = np.arange(w_sp * n_ch)
    P = (idx[:, None] % n_ch == idx[None, :] % n_ch).astype(np.float32) / w_sp
    return jnp.asarray(P)


def basic_block_pallas(x_nchw, w1_oihw, w2_oihw, g1, b1, g2, b2):
    """BasicBlock forward. PyTorch-convention tensors (NCHW / OIHW / (C,)),
    NCHW out.  All layout work is boundary glue; compute is in the kernel."""
    N, C, H, W = x_nchw.shape
    O = w1_oihw.shape[0]
    assert C == O, "identity-shortcut configuration requires in_planes == planes"

    WC, WO, NH = W * C, W * O, N * H

    x2d = jnp.transpose(x_nchw, (0, 2, 3, 1)).reshape(NH, WC)    # lane-dense (NH, 128)
    w1b = pack_banded_weights(w1_oihw, W)
    w2b = pack_banded_weights(w2_oihw, W)
    pfold = make_fold_broadcast(W, O)                             # (WO, WO) f32
    # gamma / beta hoisted to lane layout (1, W*O) on the host.
    g1t = jnp.tile(g1.reshape(1, O).astype(jnp.float32), (1, W))
    b1t = jnp.tile(b1.reshape(1, O).astype(jnp.float32), (1, W))
    g2t = jnp.tile(g2.reshape(1, O).astype(jnp.float32), (1, W))
    b2t = jnp.tile(b2.reshape(1, O).astype(jnp.float32), (1, W))

    out2d = pl.pallas_call(
        make_basic_block_kernel(H),
        out_shape=jax.ShapeDtypeStruct((NH, WO), jnp.float32),
        grid=(1,),
        in_specs=[
            pl.BlockSpec((NH, WC), lambda i: (0, 0)),
            pl.BlockSpec((3, WC, WO), lambda i: (0, 0, 0)),
            pl.BlockSpec((3, WC, WO), lambda i: (0, 0, 0)),
            pl.BlockSpec((WO, WO), lambda i: (0, 0)),
            pl.BlockSpec((1, WO), lambda i: (0, 0)),
            pl.BlockSpec((1, WO), lambda i: (0, 0)),
            pl.BlockSpec((1, WO), lambda i: (0, 0)),
            pl.BlockSpec((1, WO), lambda i: (0, 0)),
        ],
        out_specs=pl.BlockSpec((NH, WO), lambda i: (0, 0)),
        compiler_params=pltpu.CompilerParams(
            dimension_semantics=("arbitrary",),
            vmem_limit_bytes=32 * 1024 * 1024),
    )(x2d, w1b, w2b, pfold, g1t, b1t, g2t, b2t)

    return jnp.transpose(out2d.reshape(N, H, W, O), (0, 3, 1, 2))


def basic_block_ref(x_nchw, w1_oihw, w2_oihw, g1, b1, g2, b2):
    """Pure-JAX (f32) reference mirroring the PyTorch forward (training-mode BN)."""
    def conv3x3(x, w):
        return jax.lax.conv_general_dilated(
            x, w, window_strides=(1, 1), padding=((1, 1), (1, 1)),
            dimension_numbers=("NCHW", "OIHW", "NCHW"))

    def bn(x, g, b):
        m = jnp.mean(x, axis=(0, 2, 3), keepdims=True)
        v = jnp.mean((x - m) ** 2, axis=(0, 2, 3), keepdims=True)
        return ((x - m) * jax.lax.rsqrt(v + EPS) * g.reshape(1, -1, 1, 1)
                + b.reshape(1, -1, 1, 1))

    out = jax.nn.relu(bn(conv3x3(x_nchw, w1_oihw), g1, b1))
    out = bn(conv3x3(out, w2_oihw), g2, b2)
    out = out + x_nchw
    return jax.nn.relu(out)


if __name__ == "__main__":
    N, C, H, W = 2, 8, 16, 16          # in_planes = planes = 8, stride = 1
    key = jax.random.PRNGKey(0)
    kx, kw1, kw2, kg1, kb1, kg2, kb2 = jax.random.split(key, 7)

    x_nchw = jax.random.normal(kx, (N, C, H, W), dtype=jnp.float32)
    w1_oihw = jax.random.normal(kw1, (C, C, 3, 3), dtype=jnp.float32) * 0.2
    w2_oihw = jax.random.normal(kw2, (C, C, 3, 3), dtype=jnp.float32) * 0.2
    g1 = 1.0 + 0.1 * jax.random.normal(kg1, (C,), dtype=jnp.float32)
    b1 = 0.1 * jax.random.normal(kb1, (C,), dtype=jnp.float32)
    g2 = 1.0 + 0.1 * jax.random.normal(kg2, (C,), dtype=jnp.float32)
    b2 = 0.1 * jax.random.normal(kb2, (C,), dtype=jnp.float32)

    out_nchw = basic_block_pallas(x_nchw, w1_oihw, w2_oihw, g1, b1, g2, b2)
    out_nchw = jax.block_until_ready(out_nchw)

    # Correctness vs f32 pure-JAX reference (tolerance covers bf16 MXU inputs).
    ref_nchw = basic_block_ref(x_nchw, w1_oihw, w2_oihw, g1, b1, g2, b2)
    np.testing.assert_allclose(np.asarray(out_nchw), np.asarray(ref_nchw),
                               rtol=3e-2, atol=3e-2)

    print("KERNEL_OK")
</pallas_src>

<mosaic_0001>
module attributes {stable_mosaic.version = 11 : i64} {
  func.func @kernel(%arg0: i32, %arg1: memref<32x128xf32, #tpu.memory_space<vmem>>, %arg2: memref<3x128x128xbf16, #tpu.memory_space<vmem>>, %arg3: memref<3x128x128xbf16, #tpu.memory_space<vmem>>, %arg4: memref<128x128xf32, #tpu.memory_space<vmem>>, %arg5: memref<1x128xf32, #tpu.memory_space<vmem>>, %arg6: memref<1x128xf32, #tpu.memory_space<vmem>>, %arg7: memref<1x128xf32, #tpu.memory_space<vmem>>, %arg8: memref<1x128xf32, #tpu.memory_space<vmem>>, %arg9: memref<32x128xf32, #tpu.memory_space<vmem>>) attributes {dimension_semantics = [#tpu.dimension_semantics<arbitrary>], iteration_bounds = array<i64: 1>, scalar_prefetch = 0 : i64, scratch_operands = 0 : i64, tpu.core_type = #tpu.core_type<tc>, window_params = [{pipeline_mode = #tpu.pipeline_mode<synchronous>, transform_indices = @transform_0, window_bounds = array<i64: 32, 128>}, {pipeline_mode = #tpu.pipeline_mode<synchronous>, transform_indices = @transform_1, window_bounds = array<i64: 3, 128, 128>}, {pipeline_mode = #tpu.pipeline_mode<synchronous>, transform_indices = @transform_2, window_bounds = array<i64: 3, 128, 128>}, {pipeline_mode = #tpu.pipeline_mode<synchronous>, transform_indices = @transform_3, window_bounds = array<i64: 128, 128>}, {pipeline_mode = #tpu.pipeline_mode<synchronous>, transform_indices = @transform_4, window_bounds = array<i64: 1, 128>}, {pipeline_mode = #tpu.pipeline_mode<synchronous>, transform_indices = @transform_5, window_bounds = array<i64: 1, 128>}, {pipeline_mode = #tpu.pipeline_mode<synchronous>, transform_indices = @transform_6, window_bounds = array<i64: 1, 128>}, {pipeline_mode = #tpu.pipeline_mode<synchronous>, transform_indices = @transform_7, window_bounds = array<i64: 1, 128>}, {pipeline_mode = #tpu.pipeline_mode<synchronous>, transform_indices = @transform_8, window_bounds = array<i64: 32, 128>}]} {
    %0 = tpu.iota {dimensions = array<i32: 0>} : vector<32x128xi32>
    %c16_i32 = arith.constant 16 : i32
    %c0_i32 = arith.constant 0 : i32
    %1 = arith.cmpi eq, %c16_i32, %c0_i32 : i32
    %c1_i32 = arith.constant 1 : i32
    %2 = arith.select %1, %c1_i32, %c16_i32 : i32
    %3 = vector.broadcast %2 : i32 to vector<32x128xi32>
    %4 = arith.remsi %0, %3 : vector<32x128xi32>
    %c0_i32_0 = arith.constant 0 : i32
    %5 = vector.broadcast %c0_i32_0 : i32 to vector<32x128xi32>
    %6 = arith.cmpi ne, %4, %5 : vector<32x128xi32>
    %c0_i32_1 = arith.constant 0 : i32
    %7 = vector.broadcast %c0_i32_1 : i32 to vector<32x128xi32>
    %8 = arith.cmpi slt, %4, %7 : vector<32x128xi32>
    %c0_i32_2 = arith.constant 0 : i32
    %9 = arith.cmpi slt, %2, %c0_i32_2 : i32
    %10 = vector.broadcast %9 : i1 to vector<32x128xi1>
    %11 = vector.broadcast %10 : vector<32x128xi1> to vector<32x128xi1>
    %12 = arith.xori %8, %11 : vector<32x128xi1>
    %13 = arith.andi %12, %6 : vector<32x128xi1>
    %14 = vector.broadcast %2 : i32 to vector<32x128xi32>
    %15 = arith.addi %4, %14 : vector<32x128xi32>
    %16 = arith.select %13, %15, %4 : vector<32x128xi1>, vector<32x128xi32>
    %c0_i32_3 = arith.constant 0 : i32
    %17 = vector.broadcast %c0_i32_3 : i32 to vector<32x128xi32>
    %18 = arith.cmpi eq, %16, %17 : vector<32x128xi32>
    %c15_i32 = arith.constant 15 : i32
    %19 = vector.broadcast %c15_i32 : i32 to vector<32x128xi32>
    %20 = arith.cmpi eq, %16, %19 : vector<32x128xi32>
    %c0 = arith.constant 0 : index
    %c0_4 = arith.constant 0 : index
    %21 = vector.load %arg1[%c0, %c0_4] : memref<32x128xf32, #tpu.memory_space<vmem>>, vector<32x128xf32>
    %22 = arith.truncf %21 : vector<32x128xf32> to vector<32x128xbf16>
    %c0_5 = arith.constant 0 : index
    %c0_6 = arith.constant 0 : index
    %c0_7 = arith.constant 0 : index
    %23 = vector.load %arg2[%c0_5, %c0_6, %c0_7] : memref<3x128x128xbf16, #tpu.memory_space<vmem>>, vector<1x128x128xbf16>
    %24 = vector.shape_cast %23 : vector<1x128x128xbf16> to vector<128x128xbf16>
    %cst = arith.constant dense<0.000000e+00> : vector<32x128xf32>
    %25 = tpu.matmul %22, %24, %cst {dimension_numbers = #tpu.dot_dimension_numbers<[1], [0], [0], [1], [0, 0, 1, 1], [], []>} : vector<32x128xbf16>, vector<128x128xbf16>, vector<32x128xf32> -> vector<32x128xf32>
    %c1 = arith.constant 1 : index
    %c0_8 = arith.constant 0 : index
    %c0_9 = arith.constant 0 : index
    %26 = vector.load %arg2[%c1, %c0_8, %c0_9] : memref<3x128x128xbf16, #tpu.memory_space<vmem>>, vector<1x128x128xbf16>
    %27 = vector.shape_cast %26 : vector<1x128x128xbf16> to vector<128x128xbf16>
    %cst_10 = arith.constant dense<0.000000e+00> : vector<32x128xf32>
    %28 = tpu.matmul %22, %27, %cst_10 {dimension_numbers = #tpu.dot_dimension_numbers<[1], [0], [0], [1], [0, 0, 1, 1], [], []>} : vector<32x128xbf16>, vector<128x128xbf16>, vector<32x128xf32> -> vector<32x128xf32>
    %c2 = arith.constant 2 : index
    %c0_11 = arith.constant 0 : index
    %c0_12 = arith.constant 0 : index
    %29 = vector.load %arg2[%c2, %c0_11, %c0_12] : memref<3x128x128xbf16, #tpu.memory_space<vmem>>, vector<1x128x128xbf16>
    %30 = vector.shape_cast %29 : vector<1x128x128xbf16> to vector<128x128xbf16>
    %cst_13 = arith.constant dense<0.000000e+00> : vector<32x128xf32>
    %31 = tpu.matmul %22, %30, %cst_13 {dimension_numbers = #tpu.dot_dimension_numbers<[1], [0], [0], [1], [0, 0, 1, 1], [], []>} : vector<32x128xbf16>, vector<128x128xbf16>, vector<32x128xf32> -> vector<32x128xf32>
    %c1_i32_14 = arith.constant 1 : i32
    %32 = tpu.dynamic_rotate %25 by %c1_i32_14 dim 0 : vector<32x128xf32>, i32 -> vector<32x128xf32>
    %cst_15 = arith.constant 0.000000e+00 : f32
    %33 = vector.broadcast %cst_15 : f32 to vector<32x128xf32>
    %34 = arith.select %18, %33, %32 : vector<32x128xi1>, vector<32x128xf32>
    %35 = arith.addf %28, %34 : vector<32x128xf32>
    %c31_i32 = arith.constant 31 : i32
    %36 = tpu.dynamic_rotate %31 by %c31_i32 dim 0 : vector<32x128xf32>, i32 -> vector<32x128xf32>
    %cst_16 = arith.constant 0.000000e+00 : f32
    %37 = vector.broadcast %cst_16 : f32 to vector<32x128xf32>
    %38 = arith.select %20, %37, %36 : vector<32x128xi1>, vector<32x128xf32>
    %39 = arith.addf %35, %38 : vector<32x128xf32>
    %cst_17 = arith.constant dense<0.000000e+00> : vector<128xf32>
    %40 = vector.multi_reduction <add>, %39, %cst_17 [0] : vector<32x128xf32> to vector<128xf32>
    %41 = vector.shape_cast %40 : vector<128xf32> to vector<1x128xf32>
    %cst_18 = arith.constant 3.125000e-02 : f32
    %42 = vector.broadcast %cst_18 : f32 to vector<1x128xf32>
    %43 = arith.mulf %41, %42 : vector<1x128xf32>
    %44 = arith.mulf %39, %39 : vector<32x128xf32>
    %cst_19 = arith.constant dense<0.000000e+00> : vector<128xf32>
    %45 = vector.multi_reduction <add>, %44, %cst_19 [0] : vector<32x128xf32> to vector<128xf32>
    %46 = vector.shape_cast %45 : vector<128xf32> to vector<1x128xf32>
    %cst_20 = arith.constant 3.125000e-02 : f32
    %47 = vector.broadcast %cst_20 : f32 to vector<1x128xf32>
    %48 = arith.mulf %46, %47 : vector<1x128xf32>
    %c0_21 = arith.constant 0 : index
    %c0_22 = arith.constant 0 : index
    %49 = vector.load %arg4[%c0_21, %c0_22] : memref<128x128xf32, #tpu.memory_space<vmem>>, vector<128x128xf32>
    %cst_23 = arith.constant dense<0.000000e+00> : vector<1x128xf32>
    %50 = tpu.matmul %43, %49, %cst_23 {dimension_numbers = #tpu.dot_dimension_numbers<[1], [0], [0], [1], [0, 0, 1, 1], [], []>} : vector<1x128xf32>, vector<128x128xf32>, vector<1x128xf32> -> vector<1x128xf32>
    %c0_24 = arith.constant 0 : index
    %c0_25 = arith.constant 0 : index
    %51 = vector.load %arg4[%c0_24, %c0_25] : memref<128x128xf32, #tpu.memory_space<vmem>>, vector<128x128xf32>
    %cst_26 = arith.constant dense<0.000000e+00> : vector<1x128xf32>
    %52 = tpu.matmul %48, %51, %cst_26 {dimension_numbers = #tpu.dot_dimension_numbers<[1], [0], [0], [1], [0, 0, 1, 1], [], []>} : vector<1x128xf32>, vector<128x128xf32>, vector<1x128xf32> -> vector<1x128xf32>
    %53 = arith.mulf %50, %50 : vector<1x128xf32>
    %54 = arith.subf %52, %53 : vector<1x128xf32>
    %c0_27 = arith.constant 0 : index
    %c0_28 = arith.constant 0 : index
    %55 = vector.load %arg5[%c0_27, %c0_28] : memref<1x128xf32, #tpu.memory_space<vmem>>, vector<1x128xf32>
    %cst_29 = arith.constant 9.99999974E-6 : f32
    %56 = vector.broadcast %cst_29 : f32 to vector<1x128xf32>
    %57 = arith.addf %54, %56 : vector<1x128xf32>
    %58 = math.rsqrt %57 : vector<1x128xf32>
    %59 = arith.mulf %55, %58 : vector<1x128xf32>
    %c0_30 = arith.constant 0 : index
    %c0_31 = arith.constant 0 : index
    %60 = vector.load %arg6[%c0_30, %c0_31] : memref<1x128xf32, #tpu.memory_space<vmem>>, vector<1x128xf32>
    %61 = arith.mulf %50, %59 : vector<1x128xf32>
    %62 = arith.subf %60, %61 : vector<1x128xf32>
    %63 = vector.broadcast %59 : vector<1x128xf32> to vector<32x128xf32>
    %64 = arith.mulf %39, %63 : vector<32x128xf32>
    %65 = vector.broadcast %62 : vector<1x128xf32> to vector<32x128xf32>
    %66 = arith.addf %64, %65 : vector<32x128xf32>
    %cst_32 = arith.constant 0.000000e+00 : f32
    %67 = vector.broadcast %cst_32 : f32 to vector<32x128xf32>
    %68 = arith.maximumf %66, %67 : vector<32x128xf32>
    %69 = arith.truncf %68 : vector<32x128xf32> to vector<32x128xbf16>
    %c0_33 = arith.constant 0 : index
    %c0_34 = arith.constant 0 : index
    %c0_35 = arith.constant 0 : index
    %70 = vector.load %arg3[%c0_33, %c0_34, %c0_35] : memref<3x128x128xbf16, #tpu.memory_space<vmem>>, vector<1x128x128xbf16>
    %71 = vector.shape_cast %70 : vector<1x128x128xbf16> to vector<128x128xbf16>
    %cst_36 = arith.constant dense<0.000000e+00> : vector<32x128xf32>
    %72 = tpu.matmul %69, %71, %cst_36 {dimension_numbers = #tpu.dot_dimension_numbers<[1], [0], [0], [1], [0, 0, 1, 1], [], []>} : vector<32x128xbf16>, vector<128x128xbf16>, vector<32x128xf32> -> vector<32x128xf32>
    %c1_37 = arith.constant 1 : index
    %c0_38 = arith.constant 0 : index
    %c0_39 = arith.constant 0 : index
    %73 = vector.load %arg3[%c1_37, %c0_38, %c0_39] : memref<3x128x128xbf16, #tpu.memory_space<vmem>>, vector<1x128x128xbf16>
    %74 = vector.shape_cast %73 : vector<1x128x128xbf16> to vector<128x128xbf16>
    %cst_40 = arith.constant dense<0.000000e+00> : vector<32x128xf32>
    %75 = tpu.matmul %69, %74, %cst_40 {dimension_numbers = #tpu.dot_dimension_numbers<[1], [0], [0], [1], [0, 0, 1, 1], [], []>} : vector<32x128xbf16>, vector<128x128xbf16>, vector<32x128xf32> -> vector<32x128xf32>
    %c2_41 = arith.constant 2 : index
    %c0_42 = arith.constant 0 : index
    %c0_43 = arith.constant 0 : index
    %76 = vector.load %arg3[%c2_41, %c0_42, %c0_43] : memref<3x128x128xbf16, #tpu.memory_space<vmem>>, vector<1x128x128xbf16>
    %77 = vector.shape_cast %76 : vector<1x128x128xbf16> to vector<128x128xbf16>
    %cst_44 = arith.constant dense<0.000000e+00> : vector<32x128xf32>
    %78 = tpu.matmul %69, %77, %cst_44 {dimension_numbers = #tpu.dot_dimension_numbers<[1], [0], [0], [1], [0, 0, 1, 1], [], []>} : vector<32x128xbf16>, vector<128x128xbf16>, vector<32x128xf32> -> vector<32x128xf32>
    %c1_i32_45 = arith.constant 1 : i32
    %79 = tpu.dynamic_rotate %72 by %c1_i32_45 dim 0 : vector<32x128xf32>, i32 -> vector<32x128xf32>
    %cst_46 = arith.constant 0.000000e+00 : f32
    %80 = vector.broadcast %cst_46 : f32 to vector<32x128xf32>
    %81 = arith.select %18, %80, %79 : vector<32x128xi1>, vector<32x128xf32>
    %82 = arith.addf %75, %81 : vector<32x128xf32>
    %c31_i32_47 = arith.constant 31 : i32
    %83 = tpu.dynamic_rotate %78 by %c31_i32_47 dim 0 : vector<32x128xf32>, i32 -> vector<32x128xf32>
    %cst_48 = arith.constant 0.000000e+00 : f32
    %84 = vector.broadcast %cst_48 : f32 to vector<32x128xf32>
    %85 = arith.select %20, %84, %83 : vector<32x128xi1>, vector<32x128xf32>
    %86 = arith.addf %82, %85 : vector<32x128xf32>
    %cst_49 = arith.constant dense<0.000000e+00> : vector<128xf32>
    %87 = vector.multi_reduction <add>, %86, %cst_49 [0] : vector<32x128xf32> to vector<128xf32>
    %88 = vector.shape_cast %87 : vector<128xf32> to vector<1x128xf32>
    %cst_50 = arith.constant 3.125000e-02 : f32
    %89 = vector.broadcast %cst_50 : f32 to vector<1x128xf32>
    %90 = arith.mulf %88, %89 : vector<1x128xf32>
    %91 = arith.mulf %86, %86 : vector<32x128xf32>
    %cst_51 = arith.constant dense<0.000000e+00> : vector<128xf32>
    %92 = vector.multi_reduction <add>, %91, %cst_51 [0] : vector<32x128xf32> to vector<128xf32>
    %93 = vector.shape_cast %92 : vector<128xf32> to vector<1x128xf32>
    %cst_52 = arith.constant 3.125000e-02 : f32
    %94 = vector.broadcast %cst_52 : f32 to vector<1x128xf32>
    %95 = arith.mulf %93, %94 : vector<1x128xf32>
    %c0_53 = arith.constant 0 : index
    %c0_54 = arith.constant 0 : index
    %96 = vector.load %arg4[%c0_53, %c0_54] : memref<128x128xf32, #tpu.memory_space<vmem>>, vector<128x128xf32>
    %cst_55 = arith.constant dense<0.000000e+00> : vector<1x128xf32>
    %97 = tpu.matmul %90, %96, %cst_55 {dimension_numbers = #tpu.dot_dimension_numbers<[1], [0], [0], [1], [0, 0, 1, 1], [], []>} : vector<1x128xf32>, vector<128x128xf32>, vector<1x128xf32> -> vector<1x128xf32>
    %c0_56 = arith.constant 0 : index
    %c0_57 = arith.constant 0 : index
    %98 = vector.load %arg4[%c0_56, %c0_57] : memref<128x128xf32, #tpu.memory_space<vmem>>, vector<128x128xf32>
    %cst_58 = arith.constant dense<0.000000e+00> : vector<1x128xf32>
    %99 = tpu.matmul %95, %98, %cst_58 {dimension_numbers = #tpu.dot_dimension_numbers<[1], [0], [0], [1], [0, 0, 1, 1], [], []>} : vector<1x128xf32>, vector<128x128xf32>, vector<1x128xf32> -> vector<1x128xf32>
    %100 = arith.mulf %97, %97 : vector<1x128xf32>
    %101 = arith.subf %99, %100 : vector<1x128xf32>
    %c0_59 = arith.constant 0 : index
    %c0_60 = arith.constant 0 : index
    %102 = vector.load %arg7[%c0_59, %c0_60] : memref<1x128xf32, #tpu.memory_space<vmem>>, vector<1x128xf32>
    %cst_61 = arith.constant 9.99999974E-6 : f32
    %103 = vector.broadcast %cst_61 : f32 to vector<1x128xf32>
    %104 = arith.addf %101, %103 : vector<1x128xf32>
    %105 = math.rsqrt %104 : vector<1x128xf32>
    %106 = arith.mulf %102, %105 : vector<1x128xf32>
    %c0_62 = arith.constant 0 : index
    %c0_63 = arith.constant 0 : index
    %107 = vector.load %arg8[%c0_62, %c0_63] : memref<1x128xf32, #tpu.memory_space<vmem>>, vector<1x128xf32>
    %108 = arith.mulf %97, %106 : vector<1x128xf32>
    %109 = arith.subf %107, %108 : vector<1x128xf32>
    %110 = vector.broadcast %106 : vector<1x128xf32> to vector<32x128xf32>
    %111 = arith.mulf %86, %110 : vector<32x128xf32>
    %112 = vector.broadcast %109 : vector<1x128xf32> to vector<32x128xf32>
    %113 = arith.addf %111, %112 : vector<32x128xf32>
    %c0_64 = arith.constant 0 : index
    %c0_65 = arith.constant 0 : index
    %114 = vector.load %arg1[%c0_64, %c0_65] : memref<32x128xf32, #tpu.memory_space<vmem>>, vector<32x128xf32>
    %115 = arith.addf %113, %114 : vector<32x128xf32>
    %cst_66 = arith.constant 0.000000e+00 : f32
    %116 = vector.broadcast %cst_66 : f32 to vector<32x128xf32>
    %117 = arith.maximumf %115, %116 : vector<32x128xf32>
    %c0_67 = arith.constant 0 : index
    %c0_68 = arith.constant 0 : index
    %118 = vector.load %arg9[%c0_67, %c0_68] : memref<32x128xf32, #tpu.memory_space<vmem>>, vector<32x128xf32>
    tpu.vector_store %arg9[%c0_67, %c0_68], %117 {strides = array<i32>} : memref<32x128xf32, #tpu.memory_space<vmem>>, vector<32x128xf32>,
    return
  }
  func.func @transform_0(%arg0: i32) -> (i32, i32) {
    %c0_i32 = arith.constant 0 : i32
    %c0_i32_0 = arith.constant 0 : i32
    %c0_i32_1 = arith.constant 0 : i32
    return %c0_i32, %c0_i32_0 : i32, i32
  }
  func.func @transform_1(%arg0: i32) -> (i32, i32, i32) {
    %c0_i32 = arith.constant 0 : i32
    %c0_i32_0 = arith.constant 0 : i32
    %c0_i32_1 = arith.constant 0 : i32
    %c0_i32_2 = arith.constant 0 : i32
    return %c0_i32, %c0_i32_0, %c0_i32_1 : i32, i32, i32
  }
  func.func @transform_2(%arg0: i32) -> (i32, i32, i32) {
    %c0_i32 = arith.constant 0 : i32
    %c0_i32_0 = arith.constant 0 : i32
    %c0_i32_1 = arith.constant 0 : i32
    %c0_i32_2 = arith.constant 0 : i32
    return %c0_i32, %c0_i32_0, %c0_i32_1 : i32, i32, i32
  }
  func.func @transform_3(%arg0: i32) -> (i32, i32) {
    %c0_i32 = arith.constant 0 : i32
    %c0_i32_0 = arith.constant 0 : i32
    %c0_i32_1 = arith.constant 0 : i32
    return %c0_i32, %c0_i32_0 : i32, i32
  }
  func.func @transform_4(%arg0: i32) -> (i32, i32) {
    %c0_i32 = arith.constant 0 : i32
    %c0_i32_0 = arith.constant 0 : i32
    %c0_i32_1 = arith.constant 0 : i32
    return %c0_i32, %c0_i32_0 : i32, i32
  }
  func.func @transform_5(%arg0: i32) -> (i32, i32) {
    %c0_i32 = arith.constant 0 : i32
    %c0_i32_0 = arith.constant 0 : i32
    %c0_i32_1 = arith.constant 0 : i32
    return %c0_i32, %c0_i32_0 : i32, i32
  }
  func.func @transform_6(%arg0: i32) -> (i32, i32) {
    %c0_i32 = arith.constant 0 : i32
    %c0_i32_0 = arith.constant 0 : i32
    %c0_i32_1 = arith.constant 0 : i32
    return %c0_i32, %c0_i32_0 : i32, i32
  }
  func.func @transform_7(%arg0: i32) -> (i32, i32) {
    %c0_i32 = arith.constant 0 : i32
    %c0_i32_0 = arith.constant 0 : i32
    %c0_i32_1 = arith.constant 0 : i32
    return %c0_i32, %c0_i32_0 : i32, i32
  }
  func.func @transform_8(%arg0: i32) -> (i32, i32) {
    %c0_i32 = arith.constant 0 : i32
    %c0_i32_0 = arith.constant 0 : i32
    %c0_i32_1 = arith.constant 0 : i32
    return %c0_i32, %c0_i32_0 : i32, i32
  }
}

</mosaic_0001>

<llo_original>
// kernel: tpu_custom_call.1
$region0: #{tpu_custom_call.1}
  #allocation0 [shape = 'u32[]', space=smem, size = 0x4, offset = 0x4, fixed_abs, tag = 'smem constant byte address 0x4 - core index']
  #allocation1 [shape = 'u32[144,128]{1,0:T(1,128)}', space=vmem, size = 0x12000, scoped, tag = 'internal scratch']
  %s0 = inlined_call_operand.hbm [shape: f32[32,128], index: 0, kind: input, shape index: {}]
  %s1 = inlined_call_operand.hbm [shape: bf16[3,128,128], index: 1, kind: input, shape index: {}]
  %s2 = inlined_call_operand.hbm [shape: bf16[3,128,128], index: 2, kind: input, shape index: {}]
  %s3 = inlined_call_operand.hbm [shape: f32[128,128], index: 3, kind: input, shape index: {}]
  %s4 = inlined_call_operand.vmem [shape: f32[1,128], index: 4, kind: input, shape index: {}]
  %s5 = inlined_call_operand.vmem [shape: f32[1,128], index: 5, kind: input, shape index: {}]
  %s6 = inlined_call_operand.vmem [shape: f32[1,128], index: 6, kind: input, shape index: {}]
  %s7 = inlined_call_operand.vmem [shape: f32[1,128], index: 7, kind: input, shape index: {}]
  %s8 = inlined_call_operand.hbm [shape: f32[32,128], index: 8, kind: output, shape index: {}]
  %s9 = sld [smem:[#allocation0]]
  $region58: #{tpu_custom_call.1} parent=0
    _
  %s11 = ssub.s32 1, %s9
  %s12 = scalar_select 0, %s11, %s9
  $region1: #{tpu_custom_call.1} parent=0
    #allocation2 [shape = 'u8[16384]{0}', space=vmem, size = 0x4000, scoped, tag = 'input window, operand 0, single buffered']
    #allocation3 [shape = 's32[1]{0}', space=sflag, size = 0x4, scoped, tag = 'scoped memory for tpu_custom_call.1']
    #allocation4 [shape = 's32[1]{0}', space=sflag, size = 0x4, scoped, tag = 'scoped memory for tpu_custom_call.1']
    #allocation5 [shape = 'u8[98304]{0}', space=vmem, size = 0x18000, scoped, tag = 'input window, operand 1, single buffered']
    #allocation6 [shape = 's32[1]{0}', space=sflag, size = 0x4, scoped, tag = 'scoped memory for tpu_custom_call.1']
    #allocation7 [shape = 'u8[98304]{0}', space=vmem, size = 0x18000, scoped, tag = 'input window, operand 2, single buffered']
    #allocation8 [shape = 'u8[65536]{0}', space=vmem, size = 0x10000, scoped, tag = 'input window, operand 3, single buffered']
    #allocation9 [shape = 's32[1]{0}', space=sflag, size = 0x4, scoped, tag = 'scoped memory for tpu_custom_call.1']
    #allocation10 [shape = 'u8[16384]{0}', space=vmem, size = 0x4000, scoped, tag = 'output window, operand 0, single buffered']
    %13 = vsyncpa [#allocation3], 0
    %14 = vsyncpa [#allocation6], 0
    %15 = vsyncpa [#allocation9], 0
    %16 = vsyncpa [#allocation4], 0
    // Predicated region
    $region2: #{tpu_custom_call.1} parent=1 // pred_check
      _
    $region3: #{tpu_custom_call.1} parent=1 // pred_check_branch
      %18 = sbr.rel (0) target = $region5
    $region4: #{tpu_custom_call.1} parent=1 // pred_region
      %s20 = ssub.s32 512, 512
      %21 = vsyncadd [#allocation3], %s20
      %s22 = sshll.u32 [#allocation2], 4
      %s23 = int_to_ptr.vmem [resolvable:$true] %s22
      %28 = dma.hbm_to_vmem [thread:$0]  %s0, 512, %s23, [#allocation3], 128, 128, 8
    $region5: #{tpu_custom_call.1} parent=1 // pred_fallthru
      _
    // Predicated region
    $region6: #{tpu_custom_call.1} parent=1 // pred_check
      _
    $region7: #{tpu_custom_call.1} parent=1 // pred_check_branch
      %30 = sbr.rel (0) target = $region9
    $region8: #{tpu_custom_call.1} parent=1 // pred_region
      %s32 = ssub.s32 3072, 3072
      %33 = vsyncadd [#allocation6], %s32
      %s34 = sshll.u32 [#allocation5], 4
      %s35 = int_to_ptr.vmem [resolvable:$true] %s34
      %40 = dma.hbm_to_vmem [thread:$0]  %s1, 3072, %s35, [#allocation6], 64, 64, 4
    $region9: #{tpu_custom_call.1} parent=1 // pred_fallthru
      _
    // Predicated region
    $region10: #{tpu_custom_call.1} parent=1 // pred_check
      _
    $region11: #{tpu_custom_call.1} parent=1 // pred_check_branch
      %42 = sbr.rel (0) target = $region13
    $region12: #{tpu_custom_call.1} parent=1 // pred_region
      %s44 = ssub.s32 3072, 3072
      %45 = vsyncadd [#allocation6], %s44
      %s46 = sshll.u32 [#allocation7], 4
      %s47 = int_to_ptr.vmem [resolvable:$true] %s46
      %52 = dma.hbm_to_vmem [thread:$0]  %s2, 3072, %s47, [#allocation6], 64, 64, 4
    $region13: #{tpu_custom_call.1} parent=1 // pred_fallthru
      _
    // Predicated region
    $region14: #{tpu_custom_call.1} parent=1 // pred_check
      _
    $region15: #{tpu_custom_call.1} parent=1 // pred_check_branch
      %54 = sbr.rel (0) target = $region17
    $region16: #{tpu_custom_call.1} parent=1 // pred_region
      %s56 = ssub.s32 2048, 2048
      %57 = vsyncadd [#allocation9], %s56
      %s58 = sshll.u32 [#allocation8], 4
      %s59 = int_to_ptr.vmem [resolvable:$true] %s58
      %64 = dma.hbm_to_vmem [thread:$0]  %s3, 2048, %s59, [#allocation9], 128, 128, 8
    $region17: #{tpu_custom_call.1} parent=1 // pred_fallthru
      _
    // Predicated region
    $region18: #{tpu_custom_call.1} parent=1 // pred_check
      _
    $region19: #{tpu_custom_call.1} parent=1 // pred_check_branch
      %66 = sbr.rel (0) target = $region21
    $region20: #{tpu_custom_call.1} parent=1 // pred_region
      _
    $region21: #{tpu_custom_call.1} parent=1 // pred_fallthru
      _
    // Predicated region
    $region22: #{tpu_custom_call.1} parent=1 // pred_check
      _
    $region23: #{tpu_custom_call.1} parent=1 // pred_check_branch
      %68 = sbr.rel (0) target = $region25
    $region24: #{tpu_custom_call.1} parent=1 // pred_region
      _
    $region25: #{tpu_custom_call.1} parent=1 // pred_fallthru
      _
    // Predicated region
    $region26: #{tpu_custom_call.1} parent=1 // pred_check
      _
    $region27: #{tpu_custom_call.1} parent=1 // pred_check_branch
      %70 = sbr.rel (0) target = $region29
    $region28: #{tpu_custom_call.1} parent=1 // pred_region
      _
    $region29: #{tpu_custom_call.1} parent=1 // pred_fallthru
      _
    // Predicated region
    $region30: #{tpu_custom_call.1} parent=1 // pred_check
      _
    $region31: #{tpu_custom_call.1} parent=1 // pred_check_branch
      %72 = sbr.rel (0) target = $region33
    $region32: #{tpu_custom_call.1} parent=1 // pred_region
      _
    $region33: #{tpu_custom_call.1} parent=1 // pred_fallthru
      _
    // Predicated region
    $region34: #{tpu_custom_call.1} parent=1 // pred_check
      _
    $region35: #{tpu_custom_call.1} parent=1 // pred_check_branch
      %74 = sbr.rel (0) target = $region37
    $region36: #{tpu_custom_call.1} parent=1 // pred_region
      %75 = dma.done [#allocation3], 512
    $region37: #{tpu_custom_call.1} parent=1 // pred_fallthru
      _
    // Predicated region
    $region38: #{tpu_custom_call.1} parent=1 // pred_check
      _
    $region39: #{tpu_custom_call.1} parent=1 // pred_check_branch
      %77 = sbr.rel (0) target = $region41
    $region40: #{tpu_custom_call.1} parent=1 // pred_region
      %78 = dma.done [#allocation6], 3072
    $region41: #{tpu_custom_call.1} parent=1 // pred_fallthru
      _
    // Predicated region
    $region42: #{tpu_custom_call.1} parent=1 // pred_check
      _
    $region43: #{tpu_custom_call.1} parent=1 // pred_check_branch
      %80 = sbr.rel (0) target = $region45
    $region44: #{tpu_custom_call.1} parent=1 // pred_region
      %81 = dma.done [#allocation6], 3072
    $region45: #{tpu_custom_call.1} parent=1 // pred_fallthru
      _
    // Predicated region
    $region46: #{tpu_custom_call.1} parent=1 // pred_check
      _
    $region47: #{tpu_custom_call.1} parent=1 // pred_check_branch
      %83 = sbr.rel (0) target = $region49
    $region48: #{tpu_custom_call.1} parent=1 // pred_region
      %84 = dma.done [#allocation9], 2048
    $region49: #{tpu_custom_call.1} parent=1 // pred_fallthru
      _
    %v86 = vlaneseq
    %v87 = vshrl.u32 %v86, 7
    %v88 = vadd.s32 %v87, 8
    %v89 = vadd.s32 %v87, 16
    %v90 = vadd.s32 %v87, 24
    %vm91 = vcmp.lt.s32.totalorder %v87, 0
    %v92 = vsub.s32 0, %v87
    %v93 = vsel %vm91, %v92, %v87
    %v94 = vshrl.u32 %v93, 4
    %v95 = vand.u32 %v93, 15
    %v96 = vsub.s32 0, %v95
    %v97 = vsel %vm91, %v96, %v95
    %vm98 = vcmp.lt.s32.totalorder %v88, 0
    %v99 = vsub.s32 0, %v88
    %v100 = vsel %vm98, %v99, %v88
    %v101 = vshrl.u32 %v100, 4
    %v102 = vand.u32 %v100, 15
    %v103 = vsub.s32 0, %v102
    %v104 = vsel %vm98, %v103, %v102
    %vm105 = vcmp.lt.s32.totalorder %v89, 0
    %v106 = vsub.s32 0, %v89
    %v107 = vsel %vm105, %v106, %v89
    %v108 = vshrl.u32 %v107, 4
    %v109 = vand.u32 %v107, 15
    %v110 = vsub.s32 0, %v109
    %v111 = vsel %vm105, %v110, %v109
    %vm112 = vcmp.lt.s32.totalorder %v90, 0
    %v113 = vsub.s32 0, %v90
    %v114 = vsel %vm112, %v113, %v90
    %v115 = vshrl.u32 %v114, 4
    %v116 = vand.u32 %v114, 15
    %v117 = vsub.s32 0, %v116
    %v118 = vsel %vm112, %v117, %v116
    %vm119 = vcmp.ne.s32.totalorder %v97, 0
    %vm120 = vcmp.ne.s32.totalorder %v104, 0
    %vm121 = vcmp.ne.s32.totalorder %v111, 0
    %vm122 = vcmp.ne.s32.totalorder %v118, 0
    %vm123 = vcmp.lt.s32.totalorder %v97, 0
    %vm124 = vcmp.lt.s32.totalorder %v104, 0
    %vm125 = vcmp.lt.s32.totalorder %v111, 0
    %vm126 = vcmp.lt.s32.totalorder %v118, 0
    %vm127 = vmand %vm123, %vm119
    %vm128 = vmand %vm124, %vm120
    %vm129 = vmand %vm125, %vm121
    %vm130 = vmand %vm126, %vm122
    %v131 = vadd.s32 %v97, 16
    %v132 = vadd.s32 %v104, 16
    %v133 = vadd.s32 %v111, 16
    %v134 = vadd.s32 %v118, 16
    %v135 = vsel %vm127, %v131, %v97
    %v136 = vsel %vm128, %v132, %v104
    %v137 = vsel %vm129, %v133, %v111
    %v138 = vsel %vm130, %v134, %v118
    %vm139 = vcmp.eq.s32.totalorder %v135, 0
    %vm140 = vcmp.eq.s32.totalorder %v136, 0
    %vm141 = vcmp.eq.s32.totalorder %v137, 0
    %vm142 = vcmp.eq.s32.totalorder %v138, 0
    %vm143 = vcmp.eq.s32.totalorder %v135, 15
    %vm144 = vcmp.eq.s32.totalorder %v136, 15
    %vm145 = vcmp.eq.s32.totalorder %v137, 15
    %vm146 = vcmp.eq.s32.totalorder %v138, 15
    %v147 = vld [vmem:[#allocation2] sm:$0xff]
    %v148 = vld [vmem:[#allocation2 + $0x8] sm:$0xff]
    %v149 = vld [vmem:[#allocation2 + $0x10] sm:$0xff]
    %v150 = vld [vmem:[#allocation2 + $0x18] sm:$0xff]
    %v151 = vpack.c.bf16 %v148, %v147
    %v152 = vpack.c.bf16 %v150, %v149
    %v153 = vld [vmem:[#allocation5] sm:$0xf]
    %v154 = vld [vmem:[#allocation5 + $0x4] sm:$0xf]
    %v155 = vld [vmem:[#allocation5 + $0x8] sm:$0xf]
    %v156 = vld [vmem:[#allocation5 + $0xc] sm:$0xf]
    %v157 = vld [vmem:[#allocation5 + $0x10] sm:$0xf]
    %v158 = vld [vmem:[#allocation5 + $0x14] sm:$0xf]
    %v159 = vld [vmem:[#allocation5 + $0x18] sm:$0xf]
    %v160 = vld [vmem:[#allocation5 + $0x1c] sm:$0xf]
    %v161 = vld [vmem:[#allocation5 + $0x20] sm:$0xf]
    %v162 = vld [vmem:[#allocation5 + $0x24] sm:$0xf]
    %v163 = vld [vmem:[#allocation5 + $0x28] sm:$0xf]
    %v164 = vld [vmem:[#allocation5 + $0x2c] sm:$0xf]
    %v165 = vld [vmem:[#allocation5 + $0x30] sm:$0xf]
    %v166 = vld [vmem:[#allocation5 + $0x34] sm:$0xf]
    %v167 = vld [vmem:[#allocation5 + $0x38] sm:$0xf]
    %v168 = vld [vmem:[#allocation5 + $0x3c] sm:$0xf]
    %v185 = vunpack.c.l.b16 %v153
    %v186 = vunpack.c.l.b16 %v154
    %v187 = vunpack.c.l.b16 %v155
    %v188 = vunpack.c.l.b16 %v156
    %v189 = vunpack.c.l.b16 %v157
    %v190 = vunpack.c.l.b16 %v158
    %v191 = vunpack.c.l.b16 %v159
    %v192 = vunpack.c.l.b16 %v160
    %v193 = vunpack.c.l.b16 %v161
    %v194 = vunpack.c.l.b16 %v162
    %v195 = vunpack.c.l.b16 %v163
    %v196 = vunpack.c.l.b16 %v164
    %v197 = vunpack.c.l.b16 %v165
    %v198 = vunpack.c.l.b16 %v166
    %v199 = vunpack.c.l.b16 %v167
    %v200 = vunpack.c.l.b16 %v168
    %v201 = vpack.c.b16 %v186, %v185
    %v202 = vpack.c.b16 %v188, %v187
    %v203 = vpack.c.b16 %v190, %v189
    %v204 = vpack.c.b16 %v192, %v191
    %v205 = vpack.c.b16 %v194, %v193
    %v206 = vpack.c.b16 %v196, %v195
    %v207 = vpack.c.b16 %v198, %v197
    %v208 = vpack.c.b16 %v200, %v199
    %217 = vmatprep.subr.bf16.mxu0 0
    %218 = vmatpush1.bf16.msra.mxu0 %v201
    %219 = vmatprep.subr.bf16.mxu0 0
    %220 = vmatpush1.bf16.msra.mxu0 %v202
    %221 = vmatprep.subr.bf16.mxu0 0
    %222 = vmatpush1.bf16.msra.mxu0 %v203
    %223 = vmatprep.subr.bf16.mxu0 0
    %224 = vmatpush1.bf16.msra.mxu0 %v204
    %225 = vmatprep.subr.bf16.mxu0 0
    %226 = vmatpush1.bf16.msra.mxu0 %v205
    %227 = vmatprep.subr.bf16.mxu0 0
    %228 = vmatpush1.bf16.msra.mxu0 %v206
    %229 = vmatprep.subr.bf16.mxu0 0
    %230 = vmatpush1.bf16.msra.mxu0 %v207
    %231 = vmatprep.subr.bf16.mxu0 0
    %232 = vmatpush1.bf16.msra.mxu0 %v208
    %233 = vmatprep.subr.bf16.mxu0 0
    %234 = vmatpush1.bf16.msra.mxu0 0
    %235 = vmatprep.subr.bf16.mxu0 0
    %236 = vmatpush1.bf16.msra.mxu0 0
    %237 = vmatprep.subr.bf16.mxu0 0
    %238 = vmatpush1.bf16.msra.mxu0 0
    %239 = vmatprep.subr.bf16.mxu0 0
    %240 = vmatpush1.bf16.msra.mxu0 0
    %241 = vmatprep.subr.bf16.mxu0 0
    %242 = vmatpush1.bf16.msra.mxu0 0
    %243 = vmatprep.subr.bf16.mxu0 0
    %244 = vmatpush1.bf16.msra.mxu0 0
    %245 = vmatprep.subr.bf16.mxu0 0
    %246 = vmatpush1.bf16.msra.mxu0 0
    %247 = vmatprep.subr.bf16.mxu0 0
    %248 = vmatpush1.bf16.msra.mxu0 0
    %249 = vmatprep.mubr.bf16.mxu0 0
    %250 = vmatmul.mubr.bf16.gmra.mrb[0].mxu0 %v151
    %v251 = vpop.f32.mrb[0].mxu0
    %v252 = vadd.f32 0.0, %v251
    %v253 = vpop.f32.mrb[0].mxu0
    %v254 = vpop.f32.mrb[0].mxu0
    %v255 = vadd.f32 0.0, %v254
    %v256 = vpop.f32.mrb[0].mxu0
    %257 = vmatprep.mubr.bf16.mxu0 0
    %258 = vmatmul.mubr.bf16.gmra.mrb[0].mxu0 %v152
    %v259 = vpop.f32.mrb[0].mxu0
    %v260 = vadd.f32 0.0, %v259
    %v261 = vpop.f32.mrb[0].mxu0
    %v262 = vpop.f32.mrb[0].mxu0
    %v263 = vadd.f32 0.0, %v262
    %v264 = vpop.f32.mrb[0].mxu0
    %265 = vdwg.mxu0
    %s266 = scalar_lea.vmem [#allocation5], 64
    %v267 = vld [vmem:[%s266] sm:$0xf]
    %v268 = vld [vmem:[%s266 + $0x4] sm:$0xf]
    %v269 = vld [vmem:[%s266 + $0x8] sm:$0xf]
    %v270 = vld [vmem:[%s266 + $0xc] sm:$0xf]
    %v271 = vld [vmem:[%s266 + $0x10] sm:$0xf]
    %v272 = vld [vmem:[%s266 + $0x14] sm:$0xf]
    %v273 = vld [vmem:[%s266 + $0x18] sm:$0xf]
    %v274 = vld [vmem:[%s266 + $0x1c] sm:$0xf]
    %v275 = vld [vmem:[%s266 + $0x20] sm:$0xf]
    %v276 = vld [vmem:[%s266 + $0x24] sm:$0xf]
    %v277 = vld [vmem:[%s266 + $0x28] sm:$0xf]
    %v278 = vld [vmem:[%s266 + $0x2c] sm:$0xf]
    %v279 = vld [vmem:[%s266 + $0x30] sm:$0xf]
    %v280 = vld [vmem:[%s266 + $0x34] sm:$0xf]
    %v281 = vld [vmem:[%s266 + $0x38] sm:$0xf]
    %v282 = vld [vmem:[%s266 + $0x3c] sm:$0xf]
    %s283 = scalar_lea.vmem [#allocation5], 128
    %v284 = vld [vmem:[%s283] sm:$0xf]
    %v285 = vld [vmem:[%s283 + $0x4] sm:$0xf]
    %v286 = vld [vmem:[%s283 + $0x8] sm:$0xf]
    %v287 = vld [vmem:[%s283 + $0xc] sm:$0xf]
    %v288 = vld [vmem:[%s283 + $0x10] sm:$0xf]
    %v289 = vld [vmem:[%s283 + $0x14] sm:$0xf]
    %v290 = vld [vmem:[%s283 + $0x18] sm:$0xf]
    %v291 = vld [vmem:[%s283 + $0x1c] sm:$0xf]
    %v292 = vld [vmem:[%s283 + $0x20] sm:$0xf]
    %v293 = vld [vmem:[%s283 + $0x24] sm:$0xf]
    %v294 = vld [vmem:[%s283 + $0x28] sm:$0xf]
    %v295 = vld [vmem:[%s283 + $0x2c] sm:$0xf]
    %v296 = vld [vmem:[%s283 + $0x30] sm:$0xf]
    %v297 = vld [vmem:[%s283 + $0x34] sm:$0xf]
    %v298 = vld [vmem:[%s283 + $0x38] sm:$0xf]
    %v299 = vld [vmem:[%s283 + $0x3c] sm:$0xf]
    %v316 = vunpack.c.l.b16 %v284
    %v317 = vunpack.c.l.b16 %v285
    %v318 = vunpack.c.l.b16 %v286
    %v319 = vunpack.c.l.b16 %v287
    %v320 = vunpack.c.l.b16 %v288
    %v321 = vunpack.c.l.b16 %v289
    %v322 = vunpack.c.l.b16 %v290
    %v323 = vunpack.c.l.b16 %v291
    %v324 = vunpack.c.l.b16 %v292
    %v325 = vunpack.c.l.b16 %v293
    %v326 = vunpack.c.l.b16 %v294
    %v327 = vunpack.c.l.b16 %v295
    %v328 = vunpack.c.l.b16 %v296
    %v329 = vunpack.c.l.b16 %v297
    %v330 = vunpack.c.l.b16 %v298
    %v331 = vunpack.c.l.b16 %v299
    %v332 = vpack.c.b16 %v317, %v316
    %v333 = vpack.c.b16 %v319, %v318
    %v334 = vpack.c.b16 %v321, %v320
    %v335 = vpack.c.b16 %v323, %v322
    %v336 = vpack.c.b16 %v325, %v324
    %v337 = vpack.c.b16 %v327, %v326
    %v338 = vpack.c.b16 %v329, %v328
    %v339 = vpack.c.b16 %v331, %v330
    %348 = vmatprep.subr.bf16.mxu0 0
    %349 = vmatpush1.bf16.msra.mxu0 %v332
    %350 = vmatprep.subr.bf16.mxu0 0
    %351 = vmatpush1.bf16.msra.mxu0 %v333
    %352 = vmatprep.subr.bf16.mxu0 0
    %353 = vmatpush1.bf16.msra.mxu0 %v334
    %354 = vmatprep.subr.bf16.mxu0 0
    %355 = vmatpush1.bf16.msra.mxu0 %v335
    %356 = vmatprep.subr.bf16.mxu0 0
    %357 = vmatpush1.bf16.msra.mxu0 %v336
    %358 = vmatprep.subr.bf16.mxu0 0
    %359 = vmatpush1.bf16.msra.mxu0 %v337
    %360 = vmatprep.subr.bf16.mxu0 0
    %361 = vmatpush1.bf16.msra.mxu0 %v338
    %362 = vmatprep.subr.bf16.mxu0 0
    %363 = vmatpush1.bf16.msra.mxu0 %v339
    %364 = vmatprep.subr.bf16.mxu0 0
    %365 = vmatpush1.bf16.msra.mxu0 0
    %366 = vmatprep.subr.bf16.mxu0 0
    %367 = vmatpush1.bf16.msra.mxu0 0
    %368 = vmatprep.subr.bf16.mxu0 0
    %369 = vmatpush1.bf16.msra.mxu0 0
    %370 = vmatprep.subr.bf16.mxu0 0
    %371 = vmatpush1.bf16.msra.mxu0 0
    %372 = vmatprep.subr.bf16.mxu0 0
    %373 = vmatpush1.bf16.msra.mxu0 0
    %374 = vmatprep.subr.bf16.mxu0 0
    %375 = vmatpush1.bf16.msra.mxu0 0
    %376 = vmatprep.subr.bf16.mxu0 0
    %377 = vmatpush1.bf16.msra.mxu0 0
    %378 = vmatprep.subr.bf16.mxu0 0
    %379 = vmatpush1.bf16.msra.mxu0 0
    %380 = vmatprep.mubr.bf16.mxu0 0
    %381 = vmatmul.mubr.bf16.gmra.mrb[0].mxu0 %v151
    %v382 = vpop.f32.mrb[0].mxu0
    %v383 = vadd.f32 0.0, %v382
    %v384 = vpop.f32.mrb[0].mxu0
    %v385 = vpop.f32.mrb[0].mxu0
    %v386 = vadd.f32 0.0, %v385
    %v387 = vpop.f32.mrb[0].mxu0
    %388 = vmatprep.mubr.bf16.mxu0 0
    %389 = vmatmul.mubr.bf16.gmra.mrb[0].mxu0 %v152
    %v390 = vpop.f32.mrb[0].mxu0
    %v391 = vadd.f32 0.0, %v390
    %v392 = vpop.f32.mrb[0].mxu0
    %v393 = vpop.f32.mrb[0].mxu0
    %v394 = vadd.f32 0.0, %v393
    %v395 = vpop.f32.mrb[0].mxu0
    %396 = vdwg.mxu0
    %v397 = vrot.slane %v252, 7
    %v398 = vrot.slane %v255, 7
    %v399 = vrot.slane %v260, 7
    %v400 = vrot.slane %v263, 7
    %vm401 = vcmp.lt.s32.totalorder %v87, 1
    %v402 = vsel %vm401, %v399, %v400
    %v403 = vsel %vm401, %v398, %v399
    %v404 = vsel %vm401, %v397, %v398
    %v405 = vsel %vm401, %v400, %v397
    %v406 = vsel %vm139, 0.0, %v405
    %v407 = vsel %vm140, 0.0, %v404
    %v408 = vsel %vm141, 0.0, %v403
    %v409 = vsel %vm142, 0.0, %v402
    %v426 = vunpack.c.l.b16 %v267
    %v427 = vunpack.c.l.b16 %v268
    %v428 = vunpack.c.l.b16 %v269
    %v429 = vunpack.c.l.b16 %v270
    %v430 = vunpack.c.l.b16 %v271
    %v431 = vunpack.c.l.b16 %v272
    %v432 = vunpack.c.l.b16 %v273
    %v433 = vunpack.c.l.b16 %v274
    %v434 = vunpack.c.l.b16 %v275
    %v435 = vunpack.c.l.b16 %v276
    %v436 = vunpack.c.l.b16 %v277
    %v437 = vunpack.c.l.b16 %v278
    %v438 = vunpack.c.l.b16 %v279
    %v439 = vunpack.c.l.b16 %v280
    %v440 = vunpack.c.l.b16 %v281
    %v441 = vunpack.c.l.b16 %v282
    %v442 = vpack.c.b16 %v427, %v426
    %v443 = vpack.c.b16 %v429, %v428
    %v444 = vpack.c.b16 %v431, %v430
    %v445 = vpack.c.b16 %v433, %v432
    %v446 = vpack.c.b16 %v435, %v434
    %v447 = vpack.c.b16 %v437, %v436
    %v448 = vpack.c.b16 %v439, %v438
    %v449 = vpack.c.b16 %v441, %v440
    %458 = vmatprep.subr.bf16.mxu0 0
    %459 = vmatpush1.bf16.msra.mxu0 %v442
    %460 = vmatprep.subr.bf16.mxu0 0
    %461 = vmatpush1.bf16.msra.mxu0 %v443
    %462 = vmatprep.subr.bf16.mxu0 0
    %463 = vmatpush1.bf16.msra.mxu0 %v444
    %464 = vmatprep.subr.bf16.mxu0 0
    %465 = vmatpush1.bf16.msra.mxu0 %v445
    %466 = vmatprep.subr.bf16.mxu0 0
    %467 = vmatpush1.bf16.msra.mxu0 %v446
    %468 = vmatprep.subr.bf16.mxu0 0
    %469 = vmatpush1.bf16.msra.mxu0 %v447
    %470 = vmatprep.subr.bf16.mxu0 0
    %471 = vmatpush1.bf16.msra.mxu0 %v448
    %472 = vmatprep.subr.bf16.mxu0 0
    %473 = vmatpush1.bf16.msra.mxu0 %v449
    %474 = vmatprep.subr.bf16.mxu0 0
    %475 = vmatpush1.bf16.msra.mxu0 0
    %476 = vmatprep.subr.bf16.mxu0 0
    %477 = vmatpush1.bf16.msra.mxu0 0
    %478 = vmatprep.subr.bf16.mxu0 0
    %479 = vmatpush1.bf16.msra.mxu0 0
    %480 = vmatprep.subr.bf16.mxu0 0
    %481 = vmatpush1.bf16.msra.mxu0 0
    %482 = vmatprep.subr.bf16.mxu0 0
    %483 = vmatpush1.bf16.msra.mxu0 0
    %484 = vmatprep.subr.bf16.mxu0 0
    %485 = vmatpush1.bf16.msra.mxu0 0
    %486 = vmatprep.subr.bf16.mxu0 0
    %487 = vmatpush1.bf16.msra.mxu0 0
    %488 = vmatprep.subr.bf16.mxu0 0
    %489 = vmatpush1.bf16.msra.mxu0 0
    %490 = vmatprep.mubr.bf16.mxu0 0
    %491 = vmatmul.mubr.bf16.gmra.mrb[0].mxu0 %v151
    %v492 = vpop.f32.mrb[0].mxu0
    %v493 = vadd.f32 %v406, %v492
    %v494 = vpop.f32.mrb[0].mxu0
    %v495 = vpop.f32.mrb[0].mxu0
    %v496 = vadd.f32 %v407, %v495
    %v497 = vpop.f32.mrb[0].mxu0
    %498 = vmatprep.mubr.bf16.mxu0 0
    %499 = vmatmul.mubr.bf16.gmra.mrb[0].mxu0 %v152
    %v500 = vpop.f32.mrb[0].mxu0
    %v501 = vadd.f32 %v408, %v500
    %v502 = vpop.f32.mrb[0].mxu0
    %v503 = vpop.f32.mrb[0].mxu0
    %v504 = vadd.f32 %v409, %v503
    %v505 = vpop.f32.mrb[0].mxu0
    %506 = vdwg.mxu0
    %v507 = vrot.slane %v383, 1
    %v508 = vrot.slane %v386, 1
    %v509 = vrot.slane %v391, 1
    %v510 = vrot.slane %v394, 1
    %vm511 = vcmp.lt.s32.totalorder %v87, 7
    %v512 = vsel %vm511, %v509, %v510
    %v513 = vsel %vm511, %v508, %v509
    %v514 = vsel %vm511, %v507, %v508
    %v515 = vsel %vm511, %v510, %v507
    %v516 = vsel %vm143, 0.0, %v514
    %v517 = vsel %vm144, 0.0, %v513
    %v518 = vsel %vm145, 0.0, %v512
    %v519 = vsel %vm146, 0.0, %v515
    %v520 = vadd.f32 %v493, %v516
    %v521 = vadd.f32 %v496, %v517
    %v522 = vadd.f32 %v501, %v518
    %v523 = vadd.f32 %v504, %v519
    %v524 = vadd.f32 %v520, %v521
    %v525 = vadd.f32 %v524, %v522
    %v526 = vadd.f32 %v525, %v523
    %v527 = vrot.slane %v526, 4
    %v528 = vadd.f32 %v526, %v527
    %v529 = vrot.slane %v528, 2
    %v530 = vadd.f32 %v528, %v529
    %v531 = vrot.slane %v530, 1
    %v532 = vadd.f32 %v530, %v531
    %v533 = vmul.f32 %v532, 0.03125
    %v534 = vmul.f32 %v520, %v520
    %v535 = vmul.f32 %v521, %v521
    %v536 = vmul.f32 %v522, %v522
    %v537 = vmul.f32 %v523, %v523
    %v538 = vadd.f32 %v534, %v535
    %v539 = vadd.f32 %v538, %v536
    %v540 = vadd.f32 %v539, %v537
    %v541 = vrot.slane %v540, 4
    %v542 = vadd.f32 %v540, %v541
    %v543 = vrot.slane %v542, 2
    %v544 = vadd.f32 %v542, %v543
    %v545 = vrot.slane %v544, 1
    %v546 = vadd.f32 %v544, %v545
    %v547 = vmul.f32 %v546, 0.03125
    %v548 = vld [vmem:[#allocation8] sm:$0xff]
    %v549 = vld [vmem:[#allocation8 + $0x8] sm:$0xff]
    %v550 = vld [vmem:[#allocation8 + $0x10] sm:$0xff]
    %v551 = vld [vmem:[#allocation8 + $0x18] sm:$0xff]
    %v552 = vld [vmem:[#allocation8 + $0x20] sm:$0xff]
    %v553 = vld [vmem:[#allocation8 + $0x28] sm:$0xff]
    %v554 = vld [vmem:[#allocation8 + $0x30] sm:$0xff]
    %v555 = vld [vmem:[#allocation8 + $0x38] sm:$0xff]
    %v556 = vld [vmem:[#allocation8 + $0x40] sm:$0xff]
    %v557 = vld [vmem:[#allocation8 + $0x48] sm:$0xff]
    %v558 = vld [vmem:[#allocation8 + $0x50] sm:$0xff]
    %v559 = vld [vmem:[#allocation8 + $0x58] sm:$0xff]
    %v560 = vld [vmem:[#allocation8 + $0x60] sm:$0xff]
    %v561 = vld [vmem:[#allocation8 + $0x68] sm:$0xff]
    %v562 = vld [vmem:[#allocation8 + $0x70] sm:$0xff]
    %v563 = vld [vmem:[#allocation8 + $0x78] sm:$0xff]
    %564 = vmatprep.subr.mxu0 0.0
    %565 = vmatpush1.msra.mxu0 %v548
    %566 = vmatprep.subr.mxu0 0.0
    %567 = vmatpush1.msra.mxu0 %v549
    %568 = vmatprep.subr.mxu0 0.0
    %569 = vmatpush1.msra.mxu0 %v550
    %570 = vmatprep.subr.mxu0 0.0
    %571 = vmatpush1.msra.mxu0 %v551
    %572 = vmatprep.subr.mxu0 0.0
    %573 = vmatpush1.msra.mxu0 %v552
    %574 = vmatprep.subr.mxu0 0.0
    %575 = vmatpush1.msra.mxu0 %v553
    %576 = vmatprep.subr.mxu0 0.0
    %577 = vmatpush1.msra.mxu0 %v554
    %578 = vmatprep.subr.mxu0 0.0
    %579 = vmatpush1.msra.mxu0 %v555
    %580 = vmatprep.subr.mxu0 0.0
    %581 = vmatpush1.msra.mxu0 %v556
    %582 = vmatprep.subr.mxu0 0.0
    %583 = vmatpush1.msra.mxu0 %v557
    %584 = vmatprep.subr.mxu0 0.0
    %585 = vmatpush1.msra.mxu0 %v558
    %586 = vmatprep.subr.mxu0 0.0
    %587 = vmatpush1.msra.mxu0 %v559
    %588 = vmatprep.subr.mxu0 0.0
    %589 = vmatpush1.msra.mxu0 %v560
    %590 = vmatprep.subr.mxu0 0.0
    %591 = vmatpush1.msra.mxu0 %v561
    %592 = vmatprep.subr.mxu0 0.0
    %593 = vmatpush1.msra.mxu0 %v562
    %594 = vmatprep.subr.mxu0 0.0
    %595 = vmatpush1.msra.mxu0 %v563
    %596 = vmatprep.subr.mxu0 0.0
    %597 = vmatpush1.msra.mxu0 0.0
    %598 = vmatprep.subr.mxu0 0.0
    %599 = vmatpush1.msra.mxu0 0.0
    %600 = vmatprep.subr.mxu0 0.0
    %601 = vmatpush1.msra.mxu0 0.0
    %602 = vmatprep.subr.mxu0 0.0
    %603 = vmatpush1.msra.mxu0 0.0
    %604 = vmatprep.subr.mxu0 0.0
    %605 = vmatpush1.msra.mxu0 0.0
    %606 = vmatprep.subr.mxu0 0.0
    %607 = vmatpush1.msra.mxu0 0.0
    %608 = vmatprep.subr.mxu0 0.0
    %609 = vmatpush1.msra.mxu0 0.0
    %610 = vmatprep.subr.mxu0 0.0
    %611 = vmatpush1.msra.mxu0 0.0
    %612 = vmatprep.subr.mxu0 0.0
    %613 = vmatpush1.msra.mxu0 0.0
    %614 = vmatprep.subr.mxu0 0.0
    %615 = vmatpush1.msra.mxu0 0.0
    %616 = vmatprep.subr.mxu0 0.0
    %617 = vmatpush1.msra.mxu0 0.0
    %618 = vmatprep.subr.mxu0 0.0
    %619 = vmatpush1.msra.mxu0 0.0
    %620 = vmatprep.subr.mxu0 0.0
    %621 = vmatpush1.msra.mxu0 0.0
    %622 = vmatprep.subr.mxu0 0.0
    %623 = vmatpush1.msra.mxu0 0.0
    %624 = vmatprep.subr.mxu0 0.0
    %625 = vmatpush1.msra.mxu0 0.0
    %626 = vmatprep.subr.mxu0 0.0
    %627 = vmatpush1.msra.mxu0 0.0
    %628 = vmatprep.mubr.f32.mxu0 0.0
    %629 = vmatmul.mubr.f32.gmra.mrb[0].mxu0 %v533
    %v630 = vpop.f32.mrb[0].mxu0
    %v631 = vadd.f32 0.0, %v630
    %v632 = vpop.f32.mrb[0].mxu0
    %633 = vdwg.mxu0
    %634 = vmatprep.subr.mxu0 0.0
    %635 = vmatpush1.msra.mxu0 %v548
    %636 = vmatprep.subr.mxu0 0.0
    %637 = vmatpush1.msra.mxu0 %v549
    %638 = vmatprep.subr.mxu0 0.0
    %639 = vmatpush1.msra.mxu0 %v550
    %640 = vmatprep.subr.mxu0 0.0
    %641 = vmatpush1.msra.mxu0 %v551
    %642 = vmatprep.subr.mxu0 0.0
    %643 = vmatpush1.msra.mxu0 %v552
    %644 = vmatprep.subr.mxu0 0.0
    %645 = vmatpush1.msra.mxu0 %v553
    %646 = vmatprep.subr.mxu0 0.0
    %647 = vmatpush1.msra.mxu0 %v554
    %648 = vmatprep.subr.mxu0 0.0
    %649 = vmatpush1.msra.mxu0 %v555
    %650 = vmatprep.subr.mxu0 0.0
    %651 = vmatpush1.msra.mxu0 %v556
    %652 = vmatprep.subr.mxu0 0.0
    %653 = vmatpush1.msra.mxu0 %v557
    %654 = vmatprep.subr.mxu0 0.0
    %655 = vmatpush1.msra.mxu0 %v558
    %656 = vmatprep.subr.mxu0 0.0
    %657 = vmatpush1.msra.mxu0 %v559
    %658 = vmatprep.subr.mxu0 0.0
    %659 = vmatpush1.msra.mxu0 %v560
    %660 = vmatprep.subr.mxu0 0.0
    %661 = vmatpush1.msra.mxu0 %v561
    %662 = vmatprep.subr.mxu0 0.0
    %663 = vmatpush1.msra.mxu0 %v562
    %664 = vmatprep.subr.mxu0 0.0
    %665 = vmatpush1.msra.mxu0 %v563
    %666 = vmatprep.subr.mxu0 0.0
    %667 = vmatpush1.msra.mxu0 0.0
    %668 = vmatprep.subr.mxu0 0.0
    %669 = vmatpush1.msra.mxu0 0.0
    %670 = vmatprep.subr.mxu0 0.0
    %671 = vmatpush1.msra.mxu0 0.0
    %672 = vmatprep.subr.mxu0 0.0
    %673 = vmatpush1.msra.mxu0 0.0
    %674 = vmatprep.subr.mxu0 0.0
    %675 = vmatpush1.msra.mxu0 0.0
    %676 = vmatprep.subr.mxu0 0.0
    %677 = vmatpush1.msra.mxu0 0.0
    %678 = vmatprep.subr.mxu0 0.0
    %679 = vmatpush1.msra.mxu0 0.0
    %680 = vmatprep.subr.mxu0 0.0
    %681 = vmatpush1.msra.mxu0 0.0
    %682 = vmatprep.subr.mxu0 0.0
    %683 = vmatpush1.msra.mxu0 0.0
    %684 = vmatprep.subr.mxu0 0.0
    %685 = vmatpush1.msra.mxu0 0.0
    %686 = vmatprep.subr.mxu0 0.0
    %687 = vmatpush1.msra.mxu0 0.0
    %688 = vmatprep.subr.mxu0 0.0
    %689 = vmatpush1.msra.mxu0 0.0
    %690 = vmatprep.subr.mxu0 0.0
    %691 = vmatpush1.msra.mxu0 0.0
    %692 = vmatprep.subr.mxu0 0.0
    %693 = vmatpush1.msra.mxu0 0.0
    %694 = vmatprep.subr.mxu0 0.0
    %695 = vmatpush1.msra.mxu0 0.0
    %696 = vmatprep.subr.mxu0 0.0
    %697 = vmatpush1.msra.mxu0 0.0
    %698 = vmatprep.mubr.f32.mxu0 0.0
    %699 = vmatmul.mubr.f32.gmra.mrb[0].mxu0 %v547
    %v700 = vpop.f32.mrb[0].mxu0
    %v701 = vadd.f32 0.0, %v700
    %v702 = vpop.f32.mrb[0].mxu0
    %703 = vdwg.mxu0
    %v704 = vmul.f32 %v631, %v631
    %v705 = vsub.f32 %v701, %v704
    %v706 = vld [vmem:[%s4] sm:$0x1]
    %v707 = vadd.f32 %v705, 1e-05
    %v708 = vrsqrt.pop %v707
    %v709 = vmul.f32 %v706, %v708
    %v710 = vld [vmem:[%s5] sm:$0x1]
    %v711 = vmul.f32 %v631, %v709
    %v712 = vsub.f32 %v710, %v711
    %v714 = vlaneseq
    %v715 = vshrl.u32 %v714, 7
    %v716 = vsub.s32 0, %v715
    %v717 = vrot.slane %v709, %v716
    %v719 = vmul.f32 %v520, %v717
    %v720 = vmul.f32 %v521, %v717
    %v721 = vmul.f32 %v522, %v717
    %v722 = vmul.f32 %v523, %v717
    %v724 = vlaneseq
    %v725 = vshrl.u32 %v724, 7
    %v726 = vsub.s32 0, %v725
    %v727 = vrot.slane %v712, %v726
    %v729 = vadd.f32 %v719, %v727
    %v730 = vadd.f32 %v720, %v727
    %v731 = vadd.f32 %v721, %v727
    %v732 = vadd.f32 %v722, %v727
    %v733 = vmax.f32 %v729, 0.0
    %v734 = vmax.f32 %v730, 0.0
    %v735 = vmax.f32 %v731, 0.0
    %v736 = vmax.f32 %v732, 0.0
    %v737 = vpack.c.bf16 %v734, %v733
    %v738 = vpack.c.bf16 %v736, %v735
    %v739 = vld [vmem:[#allocation7] sm:$0xf]
    %v740 = vld [vmem:[#allocation7 + $0x4] sm:$0xf]
    %v741 = vld [vmem:[#allocation7 + $0x8] sm:$0xf]
    %v742 = vld [vmem:[#allocation7 + $0xc] sm:$0xf]
    %v743 = vld [vmem:[#allocation7 + $0x10] sm:$0xf]
    %v744 = vld [vmem:[#allocation7 + $0x14] sm:$0xf]
    %v745 = vld [vmem:[#allocation7 + $0x18] sm:$0xf]
    %v746 = vld [vmem:[#allocation7 + $0x1c] sm:$0xf]
    %v747 = vld [vmem:[#allocation7 + $0x20] sm:$0xf]
    %v748 = vld [vmem:[#allocation7 + $0x24] sm:$0xf]
    %v749 = vld [vmem:[#allocation7 + $0x28] sm:$0xf]
    %v750 = vld [vmem:[#allocation7 + $0x2c] sm:$0xf]
    %v751 = vld [vmem:[#allocation7 + $0x30] sm:$0xf]
    %v752 = vld [vmem:[#allocation7 + $0x34] sm:$0xf]
    %v753 = vld [vmem:[#allocation7 + $0x38] sm:$0xf]
    %v754 = vld [vmem:[#allocation7 + $0x3c] sm:$0xf]
    %v771 = vunpack.c.l.b16 %v739
    %v772 = vunpack.c.l.b16 %v740
    %v773 = vunpack.c.l.b16 %v741
    %v774 = vunpack.c.l.b16 %v742
    %v775 = vunpack.c.l.b16 %v743
    %v776 = vunpack.c.l.b16 %v744
    %v777 = vunpack.c.l.b16 %v745
    %v778 = vunpack.c.l.b16 %v746
    %v779 = vunpack.c.l.b16 %v747
    %v780 = vunpack.c.l.b16 %v748
    %v781 = vunpack.c.l.b16 %v749
    %v782 = vunpack.c.l.b16 %v750
    %v783 = vunpack.c.l.b16 %v751
    %v784 = vunpack.c.l.b16 %v752
    %v785 = vunpack.c.l.b16 %v753
    %v786 = vunpack.c.l.b16 %v754
    %v787 = vpack.c.b16 %v772, %v771
    %v788 = vpack.c.b16 %v774, %v773
    %v789 = vpack.c.b16 %v776, %v775
    %v790 = vpack.c.b16 %v778, %v777
    %v791 = vpack.c.b16 %v780, %v779
    %v792 = vpack.c.b16 %v782, %v781
    %v793 = vpack.c.b16 %v784, %v783
    %v794 = vpack.c.b16 %v786, %v785
    %803 = vmatprep.subr.bf16.mxu0 0
    %804 = vmatpush1.bf16.msra.mxu0 %v787
    %805 = vmatprep.subr.bf16.mxu0 0
    %806 = vmatpush1.bf16.msra.mxu0 %v788
    %807 = vmatprep.subr.bf16.mxu0 0
    %808 = vmatpush1.bf16.msra.mxu0 %v789
    %809 = vmatprep.subr.bf16.mxu0 0
    %810 = vmatpush1.bf16.msra.mxu0 %v790
    %811 = vmatprep.subr.bf16.mxu0 0
    %812 = vmatpush1.bf16.msra.mxu0 %v791
    %813 = vmatprep.subr.bf16.mxu0 0
    %814 = vmatpush1.bf16.msra.mxu0 %v792
    %815 = vmatprep.subr.bf16.mxu0 0
    %816 = vmatpush1.bf16.msra.mxu0 %v793
    %817 = vmatprep.subr.bf16.mxu0 0
    %818 = vmatpush1.bf16.msra.mxu0 %v794
    %819 = vmatprep.subr.bf16.mxu0 0
    %820 = vmatpush1.bf16.msra.mxu0 0
    %821 = vmatprep.subr.bf16.mxu0 0
    %822 = vmatpush1.bf16.msra.mxu0 0
    %823 = vmatprep.subr.bf16.mxu0 0
    %824 = vmatpush1.bf16.msra.mxu0 0
    %825 = vmatprep.subr.bf16.mxu0 0
    %826 = vmatpush1.bf16.msra.mxu0 0
    %827 = vmatprep.subr.bf16.mxu0 0
    %828 = vmatpush1.bf16.msra.mxu0 0
    %829 = vmatprep.subr.bf16.mxu0 0
    %830 = vmatpush1.bf16.msra.mxu0 0
    %831 = vmatprep.subr.bf16.mxu0 0
    %832 = vmatpush1.bf16.msra.mxu0 0
    %833 = vmatprep.subr.bf16.mxu0 0
    %834 = vmatpush1.bf16.msra.mxu0 0
    %835 = vmatprep.mubr.bf16.mxu0 0
    %836 = vmatmul.mubr.bf16.gmra.mrb[0].mxu0 %v737
    %v837 = vpop.f32.mrb[0].mxu0
    %v838 = vadd.f32 0.0, %v837
    %v839 = vpop.f32.mrb[0].mxu0
    %v840 = vpop.f32.mrb[0].mxu0
    %v841 = vadd.f32 0.0, %v840
    %v842 = vpop.f32.mrb[0].mxu0
    %843 = vmatprep.mubr.bf16.mxu0 0
    %844 = vmatmul.mubr.bf16.gmra.mrb[0].mxu0 %v738
    %v845 = vpop.f32.mrb[0].mxu0
    %v846 = vadd.f32 0.0, %v845
    %v847 = vpop.f32.mrb[0].mxu0
    %v848 = vpop.f32.mrb[0].mxu0
    %v849 = vadd.f32 0.0, %v848
    %v850 = vpop.f32.mrb[0].mxu0
    %851 = vdwg.mxu0
    %s852 = scalar_lea.vmem [#allocation7], 64
    %v853 = vld [vmem:[%s852] sm:$0xf]
    %v854 = vld [vmem:[%s852 + $0x4] sm:$0xf]
    %v855 = vld [vmem:[%s852 + $0x8] sm:$0xf]
    %v856 = vld [vmem:[%s852 + $0xc] sm:$0xf]
    %v857 = vld [vmem:[%s852 + $0x10] sm:$0xf]
    %v858 = vld [vmem:[%s852 + $0x14] sm:$0xf]
    %v859 = vld [vmem:[%s852 + $0x18] sm:$0xf]
    %v860 = vld [vmem:[%s852 + $0x1c] sm:$0xf]
    %v861 = vld [vmem:[%s852 + $0x20] sm:$0xf]
    %v862 = vld [vmem:[%s852 + $0x24] sm:$0xf]
    %v863 = vld [vmem:[%s852 + $0x28] sm:$0xf]
    %v864 = vld [vmem:[%s852 + $0x2c] sm:$0xf]
    %v865 = vld [vmem:[%s852 + $0x30] sm:$0xf]
    %v866 = vld [vmem:[%s852 + $0x34] sm:$0xf]
    %v867 = vld [vmem:[%s852 + $0x38] sm:$0xf]
    %v868 = vld [vmem:[%s852 + $0x3c] sm:$0xf]
    %s869 = scalar_lea.vmem [#allocation7], 128
    %v870 = vld [vmem:[%s869] sm:$0xf]
    %v871 = vld [vmem:[%s869 + $0x4] sm:$0xf]
    %v872 = vld [vmem:[%s869 + $0x8] sm:$0xf]
    %v873 = vld [vmem:[%s869 + $0xc] sm:$0xf]
    %v874 = vld [vmem:[%s869 + $0x10] sm:$0xf]
    %v875 = vld [vmem:[%s869 + $0x14] sm:$0xf]
    %v876 = vld [vmem:[%s869 + $0x18] sm:$0xf]
    %v877 = vld [vmem:[%s869 + $0x1c] sm:$0xf]
    %v878 = vld [vmem:[%s869 + $0x20] sm:$0xf]
    %v879 = vld [vmem:[%s869 + $0x24] sm:$0xf]
    %v880 = vld [vmem:[%s869 + $0x28] sm:$0xf]
    %v881 = vld [vmem:[%s869 + $0x2c] sm:$0xf]
    %v882 = vld [vmem:[%s869 + $0x30] sm:$0xf]
    %v883 = vld [vmem:[%s869 + $0x34] sm:$0xf]
    %v884 = vld [vmem:[%s869 + $0x38] sm:$0xf]
    %v885 = vld [vmem:[%s869 + $0x3c] sm:$0xf]
    %v902 = vunpack.c.l.b16 %v870
    %v903 = vunpack.c.l.b16 %v871
    %v904 = vunpack.c.l.b16 %v872
    %v905 = vunpack.c.l.b16 %v873
    %v906 = vunpack.c.l.b16 %v874
    %v907 = vunpack.c.l.b16 %v875
    %v908 = vunpack.c.l.b16 %v876
    %v909 = vunpack.c.l.b16 %v877
    %v910 = vunpack.c.l.b16 %v878
    %v911 = vunpack.c.l.b16 %v879
    %v912 = vunpack.c.l.b16 %v880
    %v913 = vunpack.c.l.b16 %v881
    %v914 = vunpack.c.l.b16 %v882
    %v915 = vunpack.c.l.b16 %v883
    %v916 = vunpack.c.l.b16 %v884
    %v917 = vunpack.c.l.b16 %v885
    %v918 = vpack.c.b16 %v903, %v902
    %v919 = vpack.c.b16 %v905, %v904
    %v920 = vpack.c.b16 %v907, %v906
    %v921 = vpack.c.b16 %v909, %v908
    %v922 = vpack.c.b16 %v911, %v910
    %v923 = vpack.c.b16 %v913, %v912
    %v924 = vpack.c.b16 %v915, %v914
    %v925 = vpack.c.b16 %v917, %v916
    %934 = vmatprep.subr.bf16.mxu0 0
    %935 = vmatpush1.bf16.msra.mxu0 %v918
    %936 = vmatprep.subr.bf16.mxu0 0
    %937 = vmatpush1.bf16.msra.mxu0 %v919
    %938 = vmatprep.subr.bf16.mxu0 0
    %939 = vmatpush1.bf16.msra.mxu0 %v920
    %940 = vmatprep.subr.bf16.mxu0 0
    %941 = vmatpush1.bf16.msra.mxu0 %v921
    %942 = vmatprep.subr.bf16.mxu0 0
    %943 = vmatpush1.bf16.msra.mxu0 %v922
    %944 = vmatprep.subr.bf16.mxu0 0
    %945 = vmatpush1.bf16.msra.mxu0 %v923
    %946 = vmatprep.subr.bf16.mxu0 0
    %947 = vmatpush1.bf16.msra.mxu0 %v924
    %948 = vmatprep.subr.bf16.mxu0 0
    %949 = vmatpush1.bf16.msra.mxu0 %v925
    %950 = vmatprep.subr.bf16.mxu0 0
    %951 = vmatpush1.bf16.msra.mxu0 0
    %952 = vmatprep.subr.bf16.mxu0 0
    %953 = vmatpush1.bf16.msra.mxu0 0
    %954 = vmatprep.subr.bf16.mxu0 0
    %955 = vmatpush1.bf16.msra.mxu0 0
    %956 = vmatprep.subr.bf16.mxu0 0
    %957 = vmatpush1.bf16.msra.mxu0 0
    %958 = vmatprep.subr.bf16.mxu0 0
    %959 = vmatpush1.bf16.msra.mxu0 0
    %960 = vmatprep.subr.bf16.mxu0 0
    %961 = vmatpush1.bf16.msra.mxu0 0
    %962 = vmatprep.subr.bf16.mxu0 0
    %963 = vmatpush1.bf16.msra.mxu0 0
    %964 = vmatprep.subr.bf16.mxu0 0
    %965 = vmatpush1.bf16.msra.mxu0 0
    %966 = vmatprep.mubr.bf16.mxu0 0
    %967 = vmatmul.mubr.bf16.gmra.mrb[0].mxu0 %v737
    %v968 = vpop.f32.mrb[0].mxu0
    %v969 = vadd.f32 0.0, %v968
    %v970 = vpop.f32.mrb[0].mxu0
    %v971 = vpop.f32.mrb[0].mxu0
    %v972 = vadd.f32 0.0, %v971
    %v973 = vpop.f32.mrb[0].mxu0
    %974 = vmatprep.mubr.bf16.mxu0 0
    %975 = vmatmul.mubr.bf16.gmra.mrb[0].mxu0 %v738
    %v976 = vpop.f32.mrb[0].mxu0
    %v977 = vadd.f32 0.0, %v976
    %v978 = vpop.f32.mrb[0].mxu0
    %v979 = vpop.f32.mrb[0].mxu0
    %v980 = vadd.f32 0.0, %v979
    %v981 = vpop.f32.mrb[0].mxu0
    %982 = vdwg.mxu0
    %v983 = vrot.slane %v838, 7
    %v984 = vrot.slane %v841, 7
    %v985 = vrot.slane %v846, 7
    %v986 = vrot.slane %v849, 7
    %v987 = vsel %vm401, %v985, %v986
    %v988 = vsel %vm401, %v984, %v985
    %v989 = vsel %vm401, %v983, %v984
    %v990 = vsel %vm401, %v986, %v983
    %v991 = vsel %vm139, 0.0, %v990
    %v992 = vsel %vm140, 0.0, %v989
    %v993 = vsel %vm141, 0.0, %v988
    %v994 = vsel %vm142, 0.0, %v987
    %v1011 = vunpack.c.l.b16 %v853
    %v1012 = vunpack.c.l.b16 %v854
    %v1013 = vunpack.c.l.b16 %v855
    %v1014 = vunpack.c.l.b16 %v856
    %v1015 = vunpack.c.l.b16 %v857
    %v1016 = vunpack.c.l.b16 %v858
    %v1017 = vunpack.c.l.b16 %v859
    %v1018 = vunpack.c.l.b16 %v860
    %v1019 = vunpack.c.l.b16 %v861
    %v1020 = vunpack.c.l.b16 %v862
    %v1021 = vunpack.c.l.b16 %v863
    %v1022 = vunpack.c.l.b16 %v864
    %v1023 = vunpack.c.l.b16 %v865
    %v1024 = vunpack.c.l.b16 %v866
    %v1025 = vunpack.c.l.b16 %v867
    %v1026 = vunpack.c.l.b16 %v868
    %v1027 = vpack.c.b16 %v1012, %v1011
    %v1028 = vpack.c.b16 %v1014, %v1013
    %v1029 = vpack.c.b16 %v1016, %v1015
    %v1030 = vpack.c.b16 %v1018, %v1017
    %v1031 = vpack.c.b16 %v1020, %v1019
    %v1032 = vpack.c.b16 %v1022, %v1021
    %v1033 = vpack.c.b16 %v1024, %v1023
    %v1034 = vpack.c.b16 %v1026, %v1025
    %1043 = vmatprep.subr.bf16.mxu0 0
    %1044 = vmatpush1.bf16.msra.mxu0 %v1027
    %1045 = vmatprep.subr.bf16.mxu0 0
    %1046 = vmatpush1.bf16.msra.mxu0 %v1028
    %1047 = vmatprep.subr.bf16.mxu0 0
    %1048 = vmatpush1.bf16.msra.mxu0 %v1029
    %1049 = vmatprep.subr.bf16.mxu0 0
    %1050 = vmatpush1.bf16.msra.mxu0 %v1030
    %1051 = vmatprep.subr.bf16.mxu0 0
    %1052 = vmatpush1.bf16.msra.mxu0 %v1031
    %1053 = vmatprep.subr.bf16.mxu0 0
    %1054 = vmatpush1.bf16.msra.mxu0 %v1032
    %1055 = vmatprep.subr.bf16.mxu0 0
    %1056 = vmatpush1.bf16.msra.mxu0 %v1033
    %1057 = vmatprep.subr.bf16.mxu0 0
    %1058 = vmatpush1.bf16.msra.mxu0 %v1034
    %1059 = vmatprep.subr.bf16.mxu0 0
    %1060 = vmatpush1.bf16.msra.mxu0 0
    %1061 = vmatprep.subr.bf16.mxu0 0
    %1062 = vmatpush1.bf16.msra.mxu0 0
    %1063 = vmatprep.subr.bf16.mxu0 0
    %1064 = vmatpush1.bf16.msra.mxu0 0
    %1065 = vmatprep.subr.bf16.mxu0 0
    %1066 = vmatpush1.bf16.msra.mxu0 0
    %1067 = vmatprep.subr.bf16.mxu0 0
    %1068 = vmatpush1.bf16.msra.mxu0 0
    %1069 = vmatprep.subr.bf16.mxu0 0
    %1070 = vmatpush1.bf16.msra.mxu0 0
    %1071 = vmatprep.subr.bf16.mxu0 0
    %1072 = vmatpush1.bf16.msra.mxu0 0
    %1073 = vmatprep.subr.bf16.mxu0 0
    %1074 = vmatpush1.bf16.msra.mxu0 0
    %1075 = vmatprep.mubr.bf16.mxu0 0
    %1076 = vmatmul.mubr.bf16.gmra.mrb[0].mxu0 %v737
    %v1077 = vpop.f32.mrb[0].mxu0
    %v1078 = vadd.f32 %v991, %v1077
    %v1079 = vpop.f32.mrb[0].mxu0
    %v1080 = vpop.f32.mrb[0].mxu0
    %v1081 = vadd.f32 %v992, %v1080
    %v1082 = vpop.f32.mrb[0].mxu0
    %1083 = vmatprep.mubr.bf16.mxu0 0
    %1084 = vmatmul.mubr.bf16.gmra.mrb[0].mxu0 %v738
    %v1085 = vpop.f32.mrb[0].mxu0
    %v1086 = vadd.f32 %v993, %v1085
    %v1087 = vpop.f32.mrb[0].mxu0
    %v1088 = vpop.f32.mrb[0].mxu0
    %v1089 = vadd.f32 %v994, %v1088
    %v1090 = vpop.f32.mrb[0].mxu0
    %1091 = vdwg.mxu0
    %v1092 = vrot.slane %v969, 1
    %v1093 = vrot.slane %v972, 1
    %v1094 = vrot.slane %v977, 1
    %v1095 = vrot.slane %v980, 1
    %v1096 = vsel %vm511, %v1094, %v1095
    %v1097 = vsel %vm511, %v1093, %v1094
    %v1098 = vsel %vm511, %v1092, %v1093
    %v1099 = vsel %vm511, %v1095, %v1092
    %v1100 = vsel %vm143, 0.0, %v1098
    %v1101 = vsel %vm144, 0.0, %v1097
    %v1102 = vsel %vm145, 0.0, %v1096
    %v1103 = vsel %vm146, 0.0, %v1099
    %v1104 = vadd.f32 %v1078, %v1100
    %v1105 = vadd.f32 %v1081, %v1101
    %v1106 = vadd.f32 %v1086, %v1102
    %v1107 = vadd.f32 %v1089, %v1103
    %v1108 = vadd.f32 %v1104, %v1105
    %v1109 = vadd.f32 %v1108, %v1106
    %v1110 = vadd.f32 %v1109, %v1107
    %v1111 = vrot.slane %v1110, 4
    %v1112 = vadd.f32 %v1110, %v1111
    %v1113 = vrot.slane %v1112, 2
    %v1114 = vadd.f32 %v1112, %v1113
    %v1115 = vrot.slane %v1114, 1
    %v1116 = vadd.f32 %v1114, %v1115
    %v1117 = vmul.f32 %v1116, 0.03125
    %v1118 = vmul.f32 %v1104, %v1104
    %v1119 = vmul.f32 %v1105, %v1105
    %v1120 = vmul.f32 %v1106, %v1106
    %v1121 = vmul.f32 %v1107, %v1107
    %v1122 = vadd.f32 %v1118, %v1119
    %v1123 = vadd.f32 %v1122, %v1120
    %v1124 = vadd.f32 %v1123, %v1121
    %v1125 = vrot.slane %v1124, 4
    %v1126 = vadd.f32 %v1124, %v1125
    %v1127 = vrot.slane %v1126, 2
    %v1128 = vadd.f32 %v1126, %v1127
    %v1129 = vrot.slane %v1128, 1
    %v1130 = vadd.f32 %v1128, %v1129
    %v1131 = vmul.f32 %v1130, 0.03125
    %1132 = vmatprep.subr.mxu0 0.0
    %1133 = vmatpush1.msra.mxu0 %v548
    %1134 = vmatprep.subr.mxu0 0.0
    %1135 = vmatpush1.msra.mxu0 %v549
    %1136 = vmatprep.subr.mxu0 0.0
    %1137 = vmatpush1.msra.mxu0 %v550
    %1138 = vmatprep.subr.mxu0 0.0
    %1139 = vmatpush1.msra.mxu0 %v551
    %1140 = vmatprep.subr.mxu0 0.0
    %1141 = vmatpush1.msra.mxu0 %v552
    %1142 = vmatprep.subr.mxu0 0.0
    %1143 = vmatpush1.msra.mxu0 %v553
    %1144 = vmatprep.subr.mxu0 0.0
    %1145 = vmatpush1.msra.mxu0 %v554
    %1146 = vmatprep.subr.mxu0 0.0
    %1147 = vmatpush1.msra.mxu0 %v555
    %1148 = vmatprep.subr.mxu0 0.0
    %1149 = vmatpush1.msra.mxu0 %v556
    %1150 = vmatprep.subr.mxu0 0.0
    %1151 = vmatpush1.msra.mxu0 %v557
    %1152 = vmatprep.subr.mxu0 0.0
    %1153 = vmatpush1.msra.mxu0 %v558
    %1154 = vmatprep.subr.mxu0 0.0
    %1155 = vmatpush1.msra.mxu0 %v559
    %1156 = vmatprep.subr.mxu0 0.0
    %1157 = vmatpush1.msra.mxu0 %v560
    %1158 = vmatprep.subr.mxu0 0.0
    %1159 = vmatpush1.msra.mxu0 %v561
    %1160 = vmatprep.subr.mxu0 0.0
    %1161 = vmatpush1.msra.mxu0 %v562
    %1162 = vmatprep.subr.mxu0 0.0
    %1163 = vmatpush1.msra.mxu0 %v563
    %1164 = vmatprep.subr.mxu0 0.0
    %1165 = vmatpush1.msra.mxu0 0.0
    %1166 = vmatprep.subr.mxu0 0.0
    %1167 = vmatpush1.msra.mxu0 0.0
    %1168 = vmatprep.subr.mxu0 0.0
    %1169 = vmatpush1.msra.mxu0 0.0
    %1170 = vmatprep.subr.mxu0 0.0
    %1171 = vmatpush1.msra.mxu0 0.0
    %1172 = vmatprep.subr.mxu0 0.0
    %1173 = vmatpush1.msra.mxu0 0.0
    %1174 = vmatprep.subr.mxu0 0.0
    %1175 = vmatpush1.msra.mxu0 0.0
    %1176 = vmatprep.subr.mxu0 0.0
    %1177 = vmatpush1.msra.mxu0 0.0
    %1178 = vmatprep.subr.mxu0 0.0
    %1179 = vmatpush1.msra.mxu0 0.0
    %1180 = vmatprep.subr.mxu0 0.0
    %1181 = vmatpush1.msra.mxu0 0.0
    %1182 = vmatprep.subr.mxu0 0.0
    %1183 = vmatpush1.msra.mxu0 0.0
    %1184 = vmatprep.subr.mxu0 0.0
    %1185 = vmatpush1.msra.mxu0 0.0
    %1186 = vmatprep.subr.mxu0 0.0
    %1187 = vmatpush1.msra.mxu0 0.0
    %1188 = vmatprep.subr.mxu0 0.0
    %1189 = vmatpush1.msra.mxu0 0.0
    %1190 = vmatprep.subr.mxu0 0.0
    %1191 = vmatpush1.msra.mxu0 0.0
    %1192 = vmatprep.subr.mxu0 0.0
    %1193 = vmatpush1.msra.mxu0 0.0
    %1194 = vmatprep.subr.mxu0 0.0
    %1195 = vmatpush1.msra.mxu0 0.0
    %1196 = vmatprep.mubr.f32.mxu0 0.0
    %1197 = vmatmul.mubr.f32.gmra.mrb[0].mxu0 %v1117
    %v1198 = vpop.f32.mrb[0].mxu0
    %v1199 = vadd.f32 0.0, %v1198
    %v1200 = vpop.f32.mrb[0].mxu0
    %1201 = vdwg.mxu0
    %1202 = vmatprep.subr.mxu0 0.0
    %1203 = vmatpush1.msra.mxu0 %v548
    %1204 = vmatprep.subr.mxu0 0.0
    %1205 = vmatpush1.msra.mxu0 %v549
    %1206 = vmatprep.subr.mxu0 0.0
    %1207 = vmatpush1.msra.mxu0 %v550
    %1208 = vmatprep.subr.mxu0 0.0
    %1209 = vmatpush1.msra.mxu0 %v551
    %1210 = vmatprep.subr.mxu0 0.0
    %1211 = vmatpush1.msra.mxu0 %v552
    %1212 = vmatprep.subr.mxu0 0.0
    %1213 = vmatpush1.msra.mxu0 %v553
    %1214 = vmatprep.subr.mxu0 0.0
    %1215 = vmatpush1.msra.mxu0 %v554
    %1216 = vmatprep.subr.mxu0 0.0
    %1217 = vmatpush1.msra.mxu0 %v555
    %1218 = vmatprep.subr.mxu0 0.0
    %1219 = vmatpush1.msra.mxu0 %v556
    %1220 = vmatprep.subr.mxu0 0.0
    %1221 = vmatpush1.msra.mxu0 %v557
    %1222 = vmatprep.subr.mxu0 0.0
    %1223 = vmatpush1.msra.mxu0 %v558
    %1224 = vmatprep.subr.mxu0 0.0
    %1225 = vmatpush1.msra.mxu0 %v559
    %1226 = vmatprep.subr.mxu0 0.0
    %1227 = vmatpush1.msra.mxu0 %v560
    %1228 = vmatprep.subr.mxu0 0.0
    %1229 = vmatpush1.msra.mxu0 %v561
    %1230 = vmatprep.subr.mxu0 0.0
    %1231 = vmatpush1.msra.mxu0 %v562
    %1232 = vmatprep.subr.mxu0 0.0
    %1233 = vmatpush1.msra.mxu0 %v563
    %1234 = vmatprep.subr.mxu0 0.0
    %1235 = vmatpush1.msra.mxu0 0.0
    %1236 = vmatprep.subr.mxu0 0.0
    %1237 = vmatpush1.msra.mxu0 0.0
    %1238 = vmatprep.subr.mxu0 0.0
    %1239 = vmatpush1.msra.mxu0 0.0
    %1240 = vmatprep.subr.mxu0 0.0
    %1241 = vmatpush1.msra.mxu0 0.0
    %1242 = vmatprep.subr.mxu0 0.0
    %1243 = vmatpush1.msra.mxu0 0.0
    %1244 = vmatprep.subr.mxu0 0.0
    %1245 = vmatpush1.msra.mxu0 0.0
    %1246 = vmatprep.subr.mxu0 0.0
    %1247 = vmatpush1.msra.mxu0 0.0
    %1248 = vmatprep.subr.mxu0 0.0
    %1249 = vmatpush1.msra.mxu0 0.0
    %1250 = vmatprep.subr.mxu0 0.0
    %1251 = vmatpush1.msra.mxu0 0.0
    %1252 = vmatprep.subr.mxu0 0.0
    %1253 = vmatpush1.msra.mxu0 0.0
    %1254 = vmatprep.subr.mxu0 0.0
    %1255 = vmatpush1.msra.mxu0 0.0
    %1256 = vmatprep.subr.mxu0 0.0
    %1257 = vmatpush1.msra.mxu0 0.0
    %1258 = vmatprep.subr.mxu0 0.0
    %1259 = vmatpush1.msra.mxu0 0.0
    %1260 = vmatprep.subr.mxu0 0.0
    %1261 = vmatpush1.msra.mxu0 0.0
    %1262 = vmatprep.subr.mxu0 0.0
    %1263 = vmatpush1.msra.mxu0 0.0
    %1264 = vmatprep.subr.mxu0 0.0
    %1265 = vmatpush1.msra.mxu0 0.0
    %1266 = vmatprep.mubr.f32.mxu0 0.0
    %1267 = vmatmul.mubr.f32.gmra.mrb[0].mxu0 %v1131
    %v1268 = vpop.f32.mrb[0].mxu0
    %v1269 = vadd.f32 0.0, %v1268
    %v1270 = vpop.f32.mrb[0].mxu0
    %1271 = vdwg.mxu0
    %v1272 = vmul.f32 %v1199, %v1199
    %v1273 = vsub.f32 %v1269, %v1272
    %v1274 = vld [vmem:[%s6] sm:$0x1]
    %v1275 = vadd.f32 %v1273, 1e-05
    %v1276 = vrsqrt.pop %v1275
    %v1277 = vmul.f32 %v1274, %v1276
    %v1278 = vld [vmem:[%s7] sm:$0x1]
    %v1279 = vmul.f32 %v1199, %v1277
    %v1280 = vsub.f32 %v1278, %v1279
    %v1282 = vlaneseq
    %v1283 = vshrl.u32 %v1282, 7
    %v1284 = vsub.s32 0, %v1283
    %v1285 = vrot.slane %v1277, %v1284
    %v1287 = vmul.f32 %v1104, %v1285
    %v1288 = vmul.f32 %v1105, %v1285
    %v1289 = vmul.f32 %v1106, %v1285
    %v1290 = vmul.f32 %v1107, %v1285
    %v1292 = vlaneseq
    %v1293 = vshrl.u32 %v1292, 7
    %v1294 = vsub.s32 0, %v1293
    %v1295 = vrot.slane %v1280, %v1294
    %v1297 = vadd.f32 %v1287, %v1295
    %v1298 = vadd.f32 %v1288, %v1295
    %v1299 = vadd.f32 %v1289, %v1295
    %v1300 = vadd.f32 %v1290, %v1295
    %v1301 = vadd.f32 %v1297, %v147
    %v1302 = vadd.f32 %v1298, %v148
    %v1303 = vadd.f32 %v1299, %v149
    %v1304 = vadd.f32 %v1300, %v150
    %v1305 = vmax.f32 %v1301, 0.0
    %v1306 = vmax.f32 %v1302, 0.0
    %v1307 = vmax.f32 %v1303, 0.0
    %v1308 = vmax.f32 %v1304, 0.0
    %1309 = vst [vmem:[#allocation10] sm:$0xff] %v1305
    %1310 = vst [vmem:[#allocation10 + $0x8] sm:$0xff] %v1306
    %1311 = vst [vmem:[#allocation10 + $0x10] sm:$0xff] %v1307
    %1312 = vst [vmem:[#allocation10 + $0x18] sm:$0xff] %v1308
    // Predicated region
    $region50: #{tpu_custom_call.1} parent=1 // pred_check
      _
    $region51: #{tpu_custom_call.1} parent=1 // pred_check_branch
      %1314 = sbr.rel (0) target = $region53
    $region52: #{tpu_custom_call.1} parent=1 // pred_region
      %s1316 = ssub.s32 512, 512
      %1317 = vsyncadd [#allocation4], %s1316
      %s1318 = sshll.u32 [#allocation10], 4
      %s1319 = int_to_ptr.vmem [resolvable:$true] %s1318
      %1324 = dma.vmem_to_hbm [thread:$0]  %s1319, 512, %s8, [#allocation4], 128, 128, 8
    $region53: #{tpu_custom_call.1} parent=1 // pred_fallthru
      _
    // Predicated region
    $region54: #{tpu_custom_call.1} parent=1 // pred_check
      _
    $region55: #{tpu_custom_call.1} parent=1 // pred_check_branch
      %1326 = sbr.rel (0) target = $region57
    $region56: #{tpu_custom_call.1} parent=1 // pred_region
      %1327 = dma.done [#allocation4], 512
    $region57: #{tpu_custom_call.1} parent=1 // pred_fallthru
      _
    %1328 = vsyncpa [#allocation3], 1
    %1329 = vsyncpa [#allocation6], 1
    %1330 = vsyncpa [#allocation9], 1
    %1331 = vsyncpa [#allocation4], 1

</llo_original>
